<compile_context>
chip_gen: v7x
topology: tpu7x:2x2x1
jax: 0.10.0
libtpu: 0.0.40
codegen_flags: <defaults>
</compile_context>

<pallas_src>
import functools

import jax
import jax.numpy as jnp
from jax import lax
from jax.experimental import pallas as pl
from jax.experimental.pallas import tpu as pltpu

LANE = 128
SUBLANE = 8


def _round_up(x, m):
    return ((x + m - 1) // m) * m


# ----------------------------------------------------------------------------
# Fused Pallas kernel: encoder + featrue_dim_change + GRU stack + last_fc
# ----------------------------------------------------------------------------
def _fused_kernel(*refs, n_enc, n_gru, Bp, T, Hp):
    it = iter(refs)
    obs_ref = next(it)                                   # (T*Bp, N)
    enc = [(next(it), next(it)) for _ in range(n_enc)]   # [(w, b), ...]
    fdc_w_ref, fdc_b_ref = next(it), next(it)            # (latent, Hp), (1, Hp)
    gru = [tuple(next(it) for _ in range(4)) for _ in range(n_gru)]
    h0_ref = next(it)                                    # (L, Bp, Hp)
    last_w_ref, last_b_ref = next(it), next(it)          # (Hp, Sp), (1, Sp)
    out_ref = next(it)                                   # (T*Bp, Sp)
    hid_ref = next(it)                                   # (L, Bp, Hp)

    f32 = jnp.float32

    # ---- proprioceptive encoder: stack of (Linear, ReLU), purely row-wise ----
    x = obs_ref[...]
    for w_ref, b_ref in enc:
        x = jnp.maximum(
            jnp.dot(x, w_ref[...], preferred_element_type=f32) + b_ref[...], 0.0)

    # ---- featrue_dim_change + ReLU; output lane-padded to Hp (pad cols == 0) --
    feats = jnp.maximum(
        jnp.dot(x, fdc_w_ref[...], preferred_element_type=f32) + fdc_b_ref[...],
        0.0)
    # feats rows are already time-major: row index = t*Bp + b.

    layer_in = feats                                      # (T*Bp, Hp)
    for l, (wih_ref, whh_ref, bih_ref, bhh_ref) in enumerate(gru):
        # Hoisted, non-recurrent input matmul for the whole sequence at once.
        gx_all = (jnp.dot(layer_in, wih_ref[...], preferred_element_type=f32)
                  + bih_ref[...])                         # (T*Bp, 3*Hp)
        whh = whh_ref[...]
        bhh = bhh_ref[...]

        h = h0_ref[l]                                     # (Bp, Hp), pad lanes 0
        outs = []
        # Fully unrolled static time loop: h stays in vregs, all slices are
        # tile-aligned ((Bp rows, 128 lanes) per gate).
        for t in range(T):
            gx = gx_all[t * Bp:(t + 1) * Bp, :]           # aligned static slice
            gh = jnp.dot(h, whh, preferred_element_type=f32) + bhh
            r = jax.nn.sigmoid(gx[:, 0:Hp] + gh[:, 0:Hp])
            z = jax.nn.sigmoid(gx[:, Hp:2 * Hp] + gh[:, Hp:2 * Hp])
            n = jnp.tanh(gx[:, 2 * Hp:3 * Hp] + r * gh[:, 2 * Hp:3 * Hp])
            h = (1.0 - z) * n + z * h
            outs.append(h)

        hid_ref[l] = h.astype(hid_ref.dtype)
        # (T*Bp, Hp) time-major sequence, tile-aligned concat along sublanes.
        layer_in = jnp.concatenate(outs, axis=0)

    # ---- last_fc on the time-major flatten; lane-dense (Sp=128-wide) store ----
    out = (jnp.dot(layer_in, last_w_ref[...], preferred_element_type=f32)
           + last_b_ref[...])
    out_ref[...] = out.astype(out_ref.dtype)


# ----------------------------------------------------------------------------
# Parameter preparation: pad weights into the lane-aligned kernel layout.
#   - each GRU gate occupies a full 128-lane slab; padded cols/rows are zero,
#     so the padded lanes of h stay exactly zero through the recurrence.
# ----------------------------------------------------------------------------
def prepare_params(params, *, hidden_size, state_shape):
    H = hidden_size
    Hp = _round_up(H, LANE)
    S = state_shape
    Sp = _round_up(S, LANE)

    def pad_gate_w(w):
        in_dim = w.shape[0]
        out = jnp.zeros((Hp, 3 * Hp), jnp.float32)
        for g in range(3):
            out = out.at[:in_dim, g * Hp:g * Hp + H].set(w[:, g * H:(g + 1) * H])
        return out

    def pad_gate_b(b):
        out = jnp.zeros((1, 3 * Hp), jnp.float32)
        for g in range(3):
            out = out.at[:, g * Hp:g * Hp + H].set(b[:, g * H:(g + 1) * H])
        return out

    rnn_in = params["fdc_w"].shape[1]
    assert rnn_in == H, "GRU is built with input_size == hidden_size"

    fdc_w = jnp.zeros((params["fdc_w"].shape[0], Hp), jnp.float32)
    fdc_w = fdc_w.at[:, :rnn_in].set(params["fdc_w"])
    fdc_b = jnp.zeros((1, Hp), jnp.float32).at[:, :rnn_in].set(params["fdc_b"])

    gru = []
    for (w_ih, w_hh, b_ih, b_hh) in params["gru"]:
        gru.append((pad_gate_w(w_ih), pad_gate_w(w_hh),
                    pad_gate_b(b_ih), pad_gate_b(b_hh)))

    last_w = jnp.zeros((Hp, Sp), jnp.float32).at[:H, :S].set(params["last_w"])
    last_b = jnp.zeros((1, Sp), jnp.float32).at[:, :S].set(params["last_b"])

    return {
        "linear_encoder": [(w, b) for (w, b) in params["linear_encoder"]],
        "fdc_w": fdc_w, "fdc_b": fdc_b,
        "gru": gru,
        "last_w": last_w, "last_b": last_b,
        "hidden_size": H, "Hp": Hp, "state_shape": S, "Sp": Sp,
    }


# ----------------------------------------------------------------------------
# Forward pass wrapper: one fused pallas_call, tiny pad/slice glue in XLA.
# ----------------------------------------------------------------------------
def state_encoder_forward(prepared, image, obs, hidden):
    assert image is None, "image branch not implemented (ImpalaBlock undefined)"
    B, T, N = obs.shape
    H = prepared["hidden_size"]
    Hp = prepared["Hp"]
    S = prepared["state_shape"]
    Sp = prepared["Sp"]
    L = len(prepared["gru"])
    Bp = _round_up(B, SUBLANE)           # sublane-aligned batch tile
    M = T * Bp

    # Time-major, batch-padded obs: row = t*Bp + b (pad rows are zero; they are
    # row-independent garbage through the net and never read back).
    obs_tm = jnp.swapaxes(obs, 0, 1).astype(jnp.float32)          # (T, B, N)
    obs_p = jnp.zeros((T, Bp, N), jnp.float32).at[:, :B, :].set(obs_tm)
    obs_p = obs_p.reshape(M, N)

    # Hidden state padded to (L, Bp, Hp); pad lanes zero so they stay zero.
    h0_p = jnp.zeros((L, Bp, Hp), jnp.float32)
    h0_p = h0_p.at[:, :B, :H].set(hidden.astype(jnp.float32))

    inputs = [obs_p]
    for w, b in prepared["linear_encoder"]:
        inputs += [w, b]
    inputs += [prepared["fdc_w"], prepared["fdc_b"]]
    for layer in prepared["gru"]:
        inputs += list(layer)
    inputs += [h0_p, prepared["last_w"], prepared["last_b"]]

    vmem = pl.BlockSpec(memory_space=pltpu.MemorySpace.VMEM)
    kernel = functools.partial(
        _fused_kernel,
        n_enc=len(prepared["linear_encoder"]),
        n_gru=L, Bp=Bp, T=T, Hp=Hp)

    out_p, hid_p = pl.pallas_call(
        kernel,
        out_shape=(jax.ShapeDtypeStruct((M, Sp), jnp.float32),
                   jax.ShapeDtypeStruct((L, Bp, Hp), jnp.float32)),
        in_specs=[vmem] * len(inputs),
        out_specs=(vmem, vmem),
    )(*inputs)

    # Slice the lane/sublane padding back off (cheap XLA slices).
    output = out_p.reshape(T, Bp, Sp)[:, :B, :S].reshape(T * B, S)
    hidden_out = hid_p[:, :B, :H]
    return output, hidden_out


# ----------------------------------------------------------------------------
# Pure-JAX reference (sanity check only; uses the unpadded parameters)
# ----------------------------------------------------------------------------
def _reference_forward(params, obs, hidden):
    B, T, N = obs.shape
    hi = lax.Precision.HIGHEST
    x = obs.reshape(B * T, N)
    for w, b in params["linear_encoder"]:
        x = jnp.maximum(jnp.dot(x, w, precision=hi) + b, 0.0)
    feats = jnp.maximum(jnp.dot(x, params["fdc_w"], precision=hi) + params["fdc_b"], 0.0)
    feats = feats.reshape(B, T, -1).swapaxes(0, 1)
    layer_in = feats
    new_hidden = []
    for l, (w_ih, w_hh, b_ih, b_hh) in enumerate(params["gru"]):
        H = hidden.shape[-1]
        h = hidden[l]
        outs = []
        for t in range(layer_in.shape[0]):
            gx = jnp.dot(layer_in[t], w_ih, precision=hi) + b_ih
            gh = jnp.dot(h, w_hh, precision=hi) + b_hh
            r = jax.nn.sigmoid(gx[:, 0:H] + gh[:, 0:H])
            z = jax.nn.sigmoid(gx[:, H:2 * H] + gh[:, H:2 * H])
            n = jnp.tanh(gx[:, 2 * H:3 * H] + r * gh[:, 2 * H:3 * H])
            h = (1.0 - z) * n + z * h
            outs.append(h)
        layer_in = jnp.stack(outs, axis=0)
        new_hidden.append(h)
    out_flat = layer_in.reshape(B * T, -1)
    output = jnp.dot(out_flat, params["last_w"], precision=hi) + params["last_b"]
    return output, jnp.stack(new_hidden, axis=0)


# ----------------------------------------------------------------------------
# Deterministic parameter init (shapes implied by the module's __init__)
# ----------------------------------------------------------------------------
def init_params(key, obs_dim, hidden_shapes, rnn_input, hidden_size, num_layers,
                state_shape):
    def dense(k, fan_in, fan_out):
        kw, kb = jax.random.split(k)
        w = 0.1 * jax.random.normal(kw, (fan_in, fan_out), jnp.float32)  # (in, out) = torch W.T
        b = 0.1 * jax.random.normal(kb, (1, fan_out), jnp.float32)
        return w, b

    keys = jax.random.split(key, 4 + len(hidden_shapes) + num_layers)
    ki = iter(keys)

    linear_encoder = []
    fan_in = obs_dim
    for h in hidden_shapes:
        linear_encoder.append(dense(next(ki), fan_in, h))
        fan_in = h

    latent_shape = fan_in                    # image=None => latent == last hidden shape
    fdc_w, fdc_b = dense(next(ki), latent_shape, rnn_input)

    gru = []
    in_dim = rnn_input                       # == hidden_size (GRU input_size=hidden_size)
    for _ in range(num_layers):
        k1, k2, k3, k4 = jax.random.split(next(ki), 4)
        w_ih = 0.1 * jax.random.normal(k1, (in_dim, 3 * hidden_size), jnp.float32)
        w_hh = 0.1 * jax.random.normal(k2, (hidden_size, 3 * hidden_size), jnp.float32)
        b_ih = 0.1 * jax.random.normal(k3, (1, 3 * hidden_size), jnp.float32)
        b_hh = 0.1 * jax.random.normal(k4, (1, 3 * hidden_size), jnp.float32)
        gru.append((w_ih, w_hh, b_ih, b_hh))
        in_dim = hidden_size

    last_w, last_b = dense(next(ki), hidden_size, state_shape)

    return {
        "linear_encoder": linear_encoder,
        "fdc_w": fdc_w, "fdc_b": fdc_b,
        "gru": gru,
        "last_w": last_w, "last_b": last_b,
    }


if __name__ == "__main__":
    # Small config consistent with the module:
    B, T = 2, 8
    obs_dim = 16
    hidden_shapes = [32, 32]       # proprioceptive_encoder hidden_shapes
    hidden_size = 32               # recurrent hidden_size (== RNN input_shape for GRU)
    rnn_input = hidden_size
    num_layers = 1
    state_shape = 8

    key = jax.random.PRNGKey(0)
    kp, ko, kh = jax.random.split(key, 3)

    params = init_params(kp, obs_dim, hidden_shapes, rnn_input, hidden_size,
                         num_layers, state_shape)
    prepared = prepare_params(params, hidden_size=hidden_size,
                              state_shape=state_shape)

    obs = jax.random.normal(ko, (B, T, obs_dim), jnp.float32)
    hidden0 = jax.random.normal(kh, (num_layers, B, hidden_size), jnp.float32)

    fwd = jax.jit(lambda o, h: state_encoder_forward(prepared, None, o, h))
    output, hidden_out = fwd(obs, hidden0)
    output = jax.block_until_ready(output)
    hidden_out = jax.block_until_ready(hidden_out)

    assert output.shape == (B * T, state_shape)
    assert hidden_out.shape == (num_layers, B, hidden_size)

    ref_out, ref_hidden = _reference_forward(params, obs, hidden0)
    assert jnp.allclose(output, ref_out, atol=1e-2, rtol=1e-2), \
        float(jnp.max(jnp.abs(output - ref_out)))
    assert jnp.allclose(hidden_out, ref_hidden, atol=1e-2, rtol=1e-2), \
        float(jnp.max(jnp.abs(hidden_out - ref_hidden)))

    print("KERNEL_OK")
</pallas_src>

<mosaic_0001>
module attributes {stable_mosaic.version = 11 : i64} {
  func.func @_fused_kernel(%arg0: memref<64x16xf32, #tpu.memory_space<vmem>>, %arg1: memref<16x32xf32, #tpu.memory_space<vmem>>, %arg2: memref<1x32xf32, #tpu.memory_space<vmem>>, %arg3: memref<32x32xf32, #tpu.memory_space<vmem>>, %arg4: memref<1x32xf32, #tpu.memory_space<vmem>>, %arg5: memref<32x128xf32, #tpu.memory_space<vmem>>, %arg6: memref<1x128xf32, #tpu.memory_space<vmem>>, %arg7: memref<128x384xf32, #tpu.memory_space<vmem>>, %arg8: memref<128x384xf32, #tpu.memory_space<vmem>>, %arg9: memref<1x384xf32, #tpu.memory_space<vmem>>, %arg10: memref<1x384xf32, #tpu.memory_space<vmem>>, %arg11: memref<1x8x128xf32, #tpu.memory_space<vmem>>, %arg12: memref<128x128xf32, #tpu.memory_space<vmem>>, %arg13: memref<1x128xf32, #tpu.memory_space<vmem>>, %arg14: memref<64x128xf32, #tpu.memory_space<vmem>>, %arg15: memref<1x8x128xf32, #tpu.memory_space<vmem>>) attributes {dimension_semantics = [], scalar_prefetch = 0 : i64, scratch_operands = 0 : i64, tpu.core_type = #tpu.core_type<tc>} {
    %c0 = arith.constant 0 : index
    %c0_0 = arith.constant 0 : index
    %0 = vector.load %arg0[%c0, %c0_0] : memref<64x16xf32, #tpu.memory_space<vmem>>, vector<64x16xf32>
    %c0_1 = arith.constant 0 : index
    %c0_2 = arith.constant 0 : index
    %1 = vector.load %arg1[%c0_1, %c0_2] : memref<16x32xf32, #tpu.memory_space<vmem>>, vector<16x32xf32>
    %cst = arith.constant dense<0.000000e+00> : vector<64x32xf32>
    %2 = tpu.matmul %0, %1, %cst {dimension_numbers = #tpu.dot_dimension_numbers<[1], [0], [0], [1], [0, 0, 1, 1], [], []>} : vector<64x16xf32>, vector<16x32xf32>, vector<64x32xf32> -> vector<64x32xf32>
    %c0_3 = arith.constant 0 : index
    %c0_4 = arith.constant 0 : index
    %3 = vector.load %arg2[%c0_3, %c0_4] : memref<1x32xf32, #tpu.memory_space<vmem>>, vector<1x32xf32>
    %4 = vector.broadcast %3 : vector<1x32xf32> to vector<64x32xf32>
    %5 = arith.addf %2, %4 : vector<64x32xf32>
    %cst_5 = arith.constant 0.000000e+00 : f32
    %6 = vector.broadcast %cst_5 : f32 to vector<64x32xf32>
    %7 = arith.maximumf %5, %6 : vector<64x32xf32>
    %c0_6 = arith.constant 0 : index
    %c0_7 = arith.constant 0 : index
    %8 = vector.load %arg3[%c0_6, %c0_7] : memref<32x32xf32, #tpu.memory_space<vmem>>, vector<32x32xf32>
    %cst_8 = arith.constant dense<0.000000e+00> : vector<64x32xf32>
    %9 = tpu.matmul %7, %8, %cst_8 {dimension_numbers = #tpu.dot_dimension_numbers<[1], [0], [0], [1], [0, 0, 1, 1], [], []>} : vector<64x32xf32>, vector<32x32xf32>, vector<64x32xf32> -> vector<64x32xf32>
    %c0_9 = arith.constant 0 : index
    %c0_10 = arith.constant 0 : index
    %10 = vector.load %arg4[%c0_9, %c0_10] : memref<1x32xf32, #tpu.memory_space<vmem>>, vector<1x32xf32>
    %11 = vector.broadcast %10 : vector<1x32xf32> to vector<64x32xf32>
    %12 = arith.addf %9, %11 : vector<64x32xf32>
    %cst_11 = arith.constant 0.000000e+00 : f32
    %13 = vector.broadcast %cst_11 : f32 to vector<64x32xf32>
    %14 = arith.maximumf %12, %13 : vector<64x32xf32>
    %c0_12 = arith.constant 0 : index
    %c0_13 = arith.constant 0 : index
    %15 = vector.load %arg5[%c0_12, %c0_13] : memref<32x128xf32, #tpu.memory_space<vmem>>, vector<32x128xf32>
    %cst_14 = arith.constant dense<0.000000e+00> : vector<64x128xf32>
    %16 = tpu.matmul %14, %15, %cst_14 {dimension_numbers = #tpu.dot_dimension_numbers<[1], [0], [0], [1], [0, 0, 1, 1], [], []>} : vector<64x32xf32>, vector<32x128xf32>, vector<64x128xf32> -> vector<64x128xf32>
    %c0_15 = arith.constant 0 : index
    %c0_16 = arith.constant 0 : index
    %17 = vector.load %arg6[%c0_15, %c0_16] : memref<1x128xf32, #tpu.memory_space<vmem>>, vector<1x128xf32>
    %18 = vector.broadcast %17 : vector<1x128xf32> to vector<64x128xf32>
    %19 = arith.addf %16, %18 : vector<64x128xf32>
    %cst_17 = arith.constant 0.000000e+00 : f32
    %20 = vector.broadcast %cst_17 : f32 to vector<64x128xf32>
    %21 = arith.maximumf %19, %20 : vector<64x128xf32>
    %c0_18 = arith.constant 0 : index
    %c0_19 = arith.constant 0 : index
    %22 = vector.load %arg7[%c0_18, %c0_19] : memref<128x384xf32, #tpu.memory_space<vmem>>, vector<128x384xf32>
    %cst_20 = arith.constant dense<0.000000e+00> : vector<64x384xf32>
    %23 = tpu.matmul %21, %22, %cst_20 {dimension_numbers = #tpu.dot_dimension_numbers<[1], [0], [0], [1], [0, 0, 1, 1], [], []>} : vector<64x128xf32>, vector<128x384xf32>, vector<64x384xf32> -> vector<64x384xf32>
    %c0_21 = arith.constant 0 : index
    %c0_22 = arith.constant 0 : index
    %24 = vector.load %arg9[%c0_21, %c0_22] : memref<1x384xf32, #tpu.memory_space<vmem>>, vector<1x384xf32>
    %25 = vector.broadcast %24 : vector<1x384xf32> to vector<64x384xf32>
    %26 = arith.addf %23, %25 : vector<64x384xf32>
    %c0_23 = arith.constant 0 : index
    %c0_24 = arith.constant 0 : index
    %27 = vector.load %arg8[%c0_23, %c0_24] : memref<128x384xf32, #tpu.memory_space<vmem>>, vector<128x384xf32>
    %c0_25 = arith.constant 0 : index
    %c0_26 = arith.constant 0 : index
    %28 = vector.load %arg10[%c0_25, %c0_26] : memref<1x384xf32, #tpu.memory_space<vmem>>, vector<1x384xf32>
    %c0_27 = arith.constant 0 : index
    %c0_28 = arith.constant 0 : index
    %c0_29 = arith.constant 0 : index
    %29 = vector.load %arg11[%c0_27, %c0_28, %c0_29] : memref<1x8x128xf32, #tpu.memory_space<vmem>>, vector<1x8x128xf32>
    %30 = vector.shape_cast %29 : vector<1x8x128xf32> to vector<8x128xf32>
    %31 = vector.extract_strided_slice %26 {offsets = [0, 0], sizes = [8, 384], strides = [1, 1]} : vector<64x384xf32> to vector<8x384xf32>
    %cst_30 = arith.constant dense<0.000000e+00> : vector<8x384xf32>
    %32 = tpu.matmul %30, %27, %cst_30 {dimension_numbers = #tpu.dot_dimension_numbers<[1], [0], [0], [1], [0, 0, 1, 1], [], []>} : vector<8x128xf32>, vector<128x384xf32>, vector<8x384xf32> -> vector<8x384xf32>
    %33 = vector.broadcast %28 : vector<1x384xf32> to vector<8x384xf32>
    %34 = arith.addf %32, %33 : vector<8x384xf32>
    %35 = vector.extract_strided_slice %31 {offsets = [0, 0], sizes = [8, 128], strides = [1, 1]} : vector<8x384xf32> to vector<8x128xf32>
    %36 = vector.extract_strided_slice %34 {offsets = [0, 0], sizes = [8, 128], strides = [1, 1]} : vector<8x384xf32> to vector<8x128xf32>
    %37 = arith.addf %35, %36 : vector<8x128xf32>
    %38 = arith.negf %37 : vector<8x128xf32>
    %39 = math.exp %38 : vector<8x128xf32>
    %cst_31 = arith.constant 1.000000e+00 : f32
    %40 = vector.broadcast %cst_31 : f32 to vector<8x128xf32>
    %41 = arith.addf %40, %39 : vector<8x128xf32>
    %42 = arith.divf %40, %41 : vector<8x128xf32>
    %43 = vector.extract_strided_slice %31 {offsets = [0, 128], sizes = [8, 128], strides = [1, 1]} : vector<8x384xf32> to vector<8x128xf32>
    %44 = vector.extract_strided_slice %34 {offsets = [0, 128], sizes = [8, 128], strides = [1, 1]} : vector<8x384xf32> to vector<8x128xf32>
    %45 = arith.addf %43, %44 : vector<8x128xf32>
    %46 = arith.negf %45 : vector<8x128xf32>
    %47 = math.exp %46 : vector<8x128xf32>
    %cst_32 = arith.constant 1.000000e+00 : f32
    %48 = vector.broadcast %cst_32 : f32 to vector<8x128xf32>
    %49 = arith.addf %48, %47 : vector<8x128xf32>
    %50 = arith.divf %48, %49 : vector<8x128xf32>
    %51 = vector.extract_strided_slice %31 {offsets = [0, 256], sizes = [8, 128], strides = [1, 1]} : vector<8x384xf32> to vector<8x128xf32>
    %52 = vector.extract_strided_slice %34 {offsets = [0, 256], sizes = [8, 128], strides = [1, 1]} : vector<8x384xf32> to vector<8x128xf32>
    %53 = arith.mulf %42, %52 : vector<8x128xf32>
    %54 = arith.addf %51, %53 : vector<8x128xf32>
    %55 = math.tanh %54 : vector<8x128xf32>
    %cst_33 = arith.constant 1.000000e+00 : f32
    %56 = vector.broadcast %cst_33 : f32 to vector<8x128xf32>
    %57 = arith.subf %56, %50 : vector<8x128xf32>
    %58 = arith.mulf %57, %55 : vector<8x128xf32>
    %59 = arith.mulf %50, %30 : vector<8x128xf32>
    %60 = arith.addf %58, %59 : vector<8x128xf32>
    %61 = vector.extract_strided_slice %26 {offsets = [8, 0], sizes = [8, 384], strides = [1, 1]} : vector<64x384xf32> to vector<8x384xf32>
    %cst_34 = arith.constant dense<0.000000e+00> : vector<8x384xf32>
    %62 = tpu.matmul %60, %27, %cst_34 {dimension_numbers = #tpu.dot_dimension_numbers<[1], [0], [0], [1], [0, 0, 1, 1], [], []>} : vector<8x128xf32>, vector<128x384xf32>, vector<8x384xf32> -> vector<8x384xf32>
    %63 = vector.broadcast %28 : vector<1x384xf32> to vector<8x384xf32>
    %64 = arith.addf %62, %63 : vector<8x384xf32>
    %65 = vector.extract_strided_slice %61 {offsets = [0, 0], sizes = [8, 128], strides = [1, 1]} : vector<8x384xf32> to vector<8x128xf32>
    %66 = vector.extract_strided_slice %64 {offsets = [0, 0], sizes = [8, 128], strides = [1, 1]} : vector<8x384xf32> to vector<8x128xf32>
    %67 = arith.addf %65, %66 : vector<8x128xf32>
    %68 = arith.negf %67 : vector<8x128xf32>
    %69 = math.exp %68 : vector<8x128xf32>
    %cst_35 = arith.constant 1.000000e+00 : f32
    %70 = vector.broadcast %cst_35 : f32 to vector<8x128xf32>
    %71 = arith.addf %70, %69 : vector<8x128xf32>
    %72 = arith.divf %70, %71 : vector<8x128xf32>
    %73 = vector.extract_strided_slice %61 {offsets = [0, 128], sizes = [8, 128], strides = [1, 1]} : vector<8x384xf32> to vector<8x128xf32>
    %74 = vector.extract_strided_slice %64 {offsets = [0, 128], sizes = [8, 128], strides = [1, 1]} : vector<8x384xf32> to vector<8x128xf32>
    %75 = arith.addf %73, %74 : vector<8x128xf32>
    %76 = arith.negf %75 : vector<8x128xf32>
    %77 = math.exp %76 : vector<8x128xf32>
    %cst_36 = arith.constant 1.000000e+00 : f32
    %78 = vector.broadcast %cst_36 : f32 to vector<8x128xf32>
    %79 = arith.addf %78, %77 : vector<8x128xf32>
    %80 = arith.divf %78, %79 : vector<8x128xf32>
    %81 = vector.extract_strided_slice %61 {offsets = [0, 256], sizes = [8, 128], strides = [1, 1]} : vector<8x384xf32> to vector<8x128xf32>
    %82 = vector.extract_strided_slice %64 {offsets = [0, 256], sizes = [8, 128], strides = [1, 1]} : vector<8x384xf32> to vector<8x128xf32>
    %83 = arith.mulf %72, %82 : vector<8x128xf32>
    %84 = arith.addf %81, %83 : vector<8x128xf32>
    %85 = math.tanh %84 : vector<8x128xf32>
    %cst_37 = arith.constant 1.000000e+00 : f32
    %86 = vector.broadcast %cst_37 : f32 to vector<8x128xf32>
    %87 = arith.subf %86, %80 : vector<8x128xf32>
    %88 = arith.mulf %87, %85 : vector<8x128xf32>
    %89 = arith.mulf %80, %60 : vector<8x128xf32>
    %90 = arith.addf %88, %89 : vector<8x128xf32>
    %91 = vector.extract_strided_slice %26 {offsets = [16, 0], sizes = [8, 384], strides = [1, 1]} : vector<64x384xf32> to vector<8x384xf32>
    %cst_38 = arith.constant dense<0.000000e+00> : vector<8x384xf32>
    %92 = tpu.matmul %90, %27, %cst_38 {dimension_numbers = #tpu.dot_dimension_numbers<[1], [0], [0], [1], [0, 0, 1, 1], [], []>} : vector<8x128xf32>, vector<128x384xf32>, vector<8x384xf32> -> vector<8x384xf32>
    %93 = vector.broadcast %28 : vector<1x384xf32> to vector<8x384xf32>
    %94 = arith.addf %92, %93 : vector<8x384xf32>
    %95 = vector.extract_strided_slice %91 {offsets = [0, 0], sizes = [8, 128], strides = [1, 1]} : vector<8x384xf32> to vector<8x128xf32>
    %96 = vector.extract_strided_slice %94 {offsets = [0, 0], sizes = [8, 128], strides = [1, 1]} : vector<8x384xf32> to vector<8x128xf32>
    %97 = arith.addf %95, %96 : vector<8x128xf32>
    %98 = arith.negf %97 : vector<8x128xf32>
    %99 = math.exp %98 : vector<8x128xf32>
    %cst_39 = arith.constant 1.000000e+00 : f32
    %100 = vector.broadcast %cst_39 : f32 to vector<8x128xf32>
    %101 = arith.addf %100, %99 : vector<8x128xf32>
    %102 = arith.divf %100, %101 : vector<8x128xf32>
    %103 = vector.extract_strided_slice %91 {offsets = [0, 128], sizes = [8, 128], strides = [1, 1]} : vector<8x384xf32> to vector<8x128xf32>
    %104 = vector.extract_strided_slice %94 {offsets = [0, 128], sizes = [8, 128], strides = [1, 1]} : vector<8x384xf32> to vector<8x128xf32>
    %105 = arith.addf %103, %104 : vector<8x128xf32>
    %106 = arith.negf %105 : vector<8x128xf32>
    %107 = math.exp %106 : vector<8x128xf32>
    %cst_40 = arith.constant 1.000000e+00 : f32
    %108 = vector.broadcast %cst_40 : f32 to vector<8x128xf32>
    %109 = arith.addf %108, %107 : vector<8x128xf32>
    %110 = arith.divf %108, %109 : vector<8x128xf32>
    %111 = vector.extract_strided_slice %91 {offsets = [0, 256], sizes = [8, 128], strides = [1, 1]} : vector<8x384xf32> to vector<8x128xf32>
    %112 = vector.extract_strided_slice %94 {offsets = [0, 256], sizes = [8, 128], strides = [1, 1]} : vector<8x384xf32> to vector<8x128xf32>
    %113 = arith.mulf %102, %112 : vector<8x128xf32>
    %114 = arith.addf %111, %113 : vector<8x128xf32>
    %115 = math.tanh %114 : vector<8x128xf32>
    %cst_41 = arith.constant 1.000000e+00 : f32
    %116 = vector.broadcast %cst_41 : f32 to vector<8x128xf32>
    %117 = arith.subf %116, %110 : vector<8x128xf32>
    %118 = arith.mulf %117, %115 : vector<8x128xf32>
    %119 = arith.mulf %110, %90 : vector<8x128xf32>
    %120 = arith.addf %118, %119 : vector<8x128xf32>
    %121 = vector.extract_strided_slice %26 {offsets = [24, 0], sizes = [8, 384], strides = [1, 1]} : vector<64x384xf32> to vector<8x384xf32>
    %cst_42 = arith.constant dense<0.000000e+00> : vector<8x384xf32>
    %122 = tpu.matmul %120, %27, %cst_42 {dimension_numbers = #tpu.dot_dimension_numbers<[1], [0], [0], [1], [0, 0, 1, 1], [], []>} : vector<8x128xf32>, vector<128x384xf32>, vector<8x384xf32> -> vector<8x384xf32>
    %123 = vector.broadcast %28 : vector<1x384xf32> to vector<8x384xf32>
    %124 = arith.addf %122, %123 : vector<8x384xf32>
    %125 = vector.extract_strided_slice %121 {offsets = [0, 0], sizes = [8, 128], strides = [1, 1]} : vector<8x384xf32> to vector<8x128xf32>
    %126 = vector.extract_strided_slice %124 {offsets = [0, 0], sizes = [8, 128], strides = [1, 1]} : vector<8x384xf32> to vector<8x128xf32>
    %127 = arith.addf %125, %126 : vector<8x128xf32>
    %128 = arith.negf %127 : vector<8x128xf32>
    %129 = math.exp %128 : vector<8x128xf32>
    %cst_43 = arith.constant 1.000000e+00 : f32
    %130 = vector.broadcast %cst_43 : f32 to vector<8x128xf32>
    %131 = arith.addf %130, %129 : vector<8x128xf32>
    %132 = arith.divf %130, %131 : vector<8x128xf32>
    %133 = vector.extract_strided_slice %121 {offsets = [0, 128], sizes = [8, 128], strides = [1, 1]} : vector<8x384xf32> to vector<8x128xf32>
    %134 = vector.extract_strided_slice %124 {offsets = [0, 128], sizes = [8, 128], strides = [1, 1]} : vector<8x384xf32> to vector<8x128xf32>
    %135 = arith.addf %133, %134 : vector<8x128xf32>
    %136 = arith.negf %135 : vector<8x128xf32>
    %137 = math.exp %136 : vector<8x128xf32>
    %cst_44 = arith.constant 1.000000e+00 : f32
    %138 = vector.broadcast %cst_44 : f32 to vector<8x128xf32>
    %139 = arith.addf %138, %137 : vector<8x128xf32>
    %140 = arith.divf %138, %139 : vector<8x128xf32>
    %141 = vector.extract_strided_slice %121 {offsets = [0, 256], sizes = [8, 128], strides = [1, 1]} : vector<8x384xf32> to vector<8x128xf32>
    %142 = vector.extract_strided_slice %124 {offsets = [0, 256], sizes = [8, 128], strides = [1, 1]} : vector<8x384xf32> to vector<8x128xf32>
    %143 = arith.mulf %132, %142 : vector<8x128xf32>
    %144 = arith.addf %141, %143 : vector<8x128xf32>
    %145 = math.tanh %144 : vector<8x128xf32>
    %cst_45 = arith.constant 1.000000e+00 : f32
    %146 = vector.broadcast %cst_45 : f32 to vector<8x128xf32>
    %147 = arith.subf %146, %140 : vector<8x128xf32>
    %148 = arith.mulf %147, %145 : vector<8x128xf32>
    %149 = arith.mulf %140, %120 : vector<8x128xf32>
    %150 = arith.addf %148, %149 : vector<8x128xf32>
    %151 = vector.extract_strided_slice %26 {offsets = [32, 0], sizes = [8, 384], strides = [1, 1]} : vector<64x384xf32> to vector<8x384xf32>
    %cst_46 = arith.constant dense<0.000000e+00> : vector<8x384xf32>
    %152 = tpu.matmul %150, %27, %cst_46 {dimension_numbers = #tpu.dot_dimension_numbers<[1], [0], [0], [1], [0, 0, 1, 1], [], []>} : vector<8x128xf32>, vector<128x384xf32>, vector<8x384xf32> -> vector<8x384xf32>
    %153 = vector.broadcast %28 : vector<1x384xf32> to vector<8x384xf32>
    %154 = arith.addf %152, %153 : vector<8x384xf32>
    %155 = vector.extract_strided_slice %151 {offsets = [0, 0], sizes = [8, 128], strides = [1, 1]} : vector<8x384xf32> to vector<8x128xf32>
    %156 = vector.extract_strided_slice %154 {offsets = [0, 0], sizes = [8, 128], strides = [1, 1]} : vector<8x384xf32> to vector<8x128xf32>
    %157 = arith.addf %155, %156 : vector<8x128xf32>
    %158 = arith.negf %157 : vector<8x128xf32>
    %159 = math.exp %158 : vector<8x128xf32>
    %cst_47 = arith.constant 1.000000e+00 : f32
    %160 = vector.broadcast %cst_47 : f32 to vector<8x128xf32>
    %161 = arith.addf %160, %159 : vector<8x128xf32>
    %162 = arith.divf %160, %161 : vector<8x128xf32>
    %163 = vector.extract_strided_slice %151 {offsets = [0, 128], sizes = [8, 128], strides = [1, 1]} : vector<8x384xf32> to vector<8x128xf32>
    %164 = vector.extract_strided_slice %154 {offsets = [0, 128], sizes = [8, 128], strides = [1, 1]} : vector<8x384xf32> to vector<8x128xf32>
    %165 = arith.addf %163, %164 : vector<8x128xf32>
    %166 = arith.negf %165 : vector<8x128xf32>
    %167 = math.exp %166 : vector<8x128xf32>
    %cst_48 = arith.constant 1.000000e+00 : f32
    %168 = vector.broadcast %cst_48 : f32 to vector<8x128xf32>
    %169 = arith.addf %168, %167 : vector<8x128xf32>
    %170 = arith.divf %168, %169 : vector<8x128xf32>
    %171 = vector.extract_strided_slice %151 {offsets = [0, 256], sizes = [8, 128], strides = [1, 1]} : vector<8x384xf32> to vector<8x128xf32>
    %172 = vector.extract_strided_slice %154 {offsets = [0, 256], sizes = [8, 128], strides = [1, 1]} : vector<8x384xf32> to vector<8x128xf32>
    %173 = arith.mulf %162, %172 : vector<8x128xf32>
    %174 = arith.addf %171, %173 : vector<8x128xf32>
    %175 = math.tanh %174 : vector<8x128xf32>
    %cst_49 = arith.constant 1.000000e+00 : f32
    %176 = vector.broadcast %cst_49 : f32 to vector<8x128xf32>
    %177 = arith.subf %176, %170 : vector<8x128xf32>
    %178 = arith.mulf %177, %175 : vector<8x128xf32>
    %179 = arith.mulf %170, %150 : vector<8x128xf32>
    %180 = arith.addf %178, %179 : vector<8x128xf32>
    %181 = vector.extract_strided_slice %26 {offsets = [40, 0], sizes = [8, 384], strides = [1, 1]} : vector<64x384xf32> to vector<8x384xf32>
    %cst_50 = arith.constant dense<0.000000e+00> : vector<8x384xf32>
    %182 = tpu.matmul %180, %27, %cst_50 {dimension_numbers = #tpu.dot_dimension_numbers<[1], [0], [0], [1], [0, 0, 1, 1], [], []>} : vector<8x128xf32>, vector<128x384xf32>, vector<8x384xf32> -> vector<8x384xf32>
    %183 = vector.broadcast %28 : vector<1x384xf32> to vector<8x384xf32>
    %184 = arith.addf %182, %183 : vector<8x384xf32>
    %185 = vector.extract_strided_slice %181 {offsets = [0, 0], sizes = [8, 128], strides = [1, 1]} : vector<8x384xf32> to vector<8x128xf32>
    %186 = vector.extract_strided_slice %184 {offsets = [0, 0], sizes = [8, 128], strides = [1, 1]} : vector<8x384xf32> to vector<8x128xf32>
    %187 = arith.addf %185, %186 : vector<8x128xf32>
    %188 = arith.negf %187 : vector<8x128xf32>
    %189 = math.exp %188 : vector<8x128xf32>
    %cst_51 = arith.constant 1.000000e+00 : f32
    %190 = vector.broadcast %cst_51 : f32 to vector<8x128xf32>
    %191 = arith.addf %190, %189 : vector<8x128xf32>
    %192 = arith.divf %190, %191 : vector<8x128xf32>
    %193 = vector.extract_strided_slice %181 {offsets = [0, 128], sizes = [8, 128], strides = [1, 1]} : vector<8x384xf32> to vector<8x128xf32>
    %194 = vector.extract_strided_slice %184 {offsets = [0, 128], sizes = [8, 128], strides = [1, 1]} : vector<8x384xf32> to vector<8x128xf32>
    %195 = arith.addf %193, %194 : vector<8x128xf32>
    %196 = arith.negf %195 : vector<8x128xf32>
    %197 = math.exp %196 : vector<8x128xf32>
    %cst_52 = arith.constant 1.000000e+00 : f32
    %198 = vector.broadcast %cst_52 : f32 to vector<8x128xf32>
    %199 = arith.addf %198, %197 : vector<8x128xf32>
    %200 = arith.divf %198, %199 : vector<8x128xf32>
    %201 = vector.extract_strided_slice %181 {offsets = [0, 256], sizes = [8, 128], strides = [1, 1]} : vector<8x384xf32> to vector<8x128xf32>
    %202 = vector.extract_strided_slice %184 {offsets = [0, 256], sizes = [8, 128], strides = [1, 1]} : vector<8x384xf32> to vector<8x128xf32>
    %203 = arith.mulf %192, %202 : vector<8x128xf32>
    %204 = arith.addf %201, %203 : vector<8x128xf32>
    %205 = math.tanh %204 : vector<8x128xf32>
    %cst_53 = arith.constant 1.000000e+00 : f32
    %206 = vector.broadcast %cst_53 : f32 to vector<8x128xf32>
    %207 = arith.subf %206, %200 : vector<8x128xf32>
    %208 = arith.mulf %207, %205 : vector<8x128xf32>
    %209 = arith.mulf %200, %180 : vector<8x128xf32>
    %210 = arith.addf %208, %209 : vector<8x128xf32>
    %211 = vector.extract_strided_slice %26 {offsets = [48, 0], sizes = [8, 384], strides = [1, 1]} : vector<64x384xf32> to vector<8x384xf32>
    %cst_54 = arith.constant dense<0.000000e+00> : vector<8x384xf32>
    %212 = tpu.matmul %210, %27, %cst_54 {dimension_numbers = #tpu.dot_dimension_numbers<[1], [0], [0], [1], [0, 0, 1, 1], [], []>} : vector<8x128xf32>, vector<128x384xf32>, vector<8x384xf32> -> vector<8x384xf32>
    %213 = vector.broadcast %28 : vector<1x384xf32> to vector<8x384xf32>
    %214 = arith.addf %212, %213 : vector<8x384xf32>
    %215 = vector.extract_strided_slice %211 {offsets = [0, 0], sizes = [8, 128], strides = [1, 1]} : vector<8x384xf32> to vector<8x128xf32>
    %216 = vector.extract_strided_slice %214 {offsets = [0, 0], sizes = [8, 128], strides = [1, 1]} : vector<8x384xf32> to vector<8x128xf32>
    %217 = arith.addf %215, %216 : vector<8x128xf32>
    %218 = arith.negf %217 : vector<8x128xf32>
    %219 = math.exp %218 : vector<8x128xf32>
    %cst_55 = arith.constant 1.000000e+00 : f32
    %220 = vector.broadcast %cst_55 : f32 to vector<8x128xf32>
    %221 = arith.addf %220, %219 : vector<8x128xf32>
    %222 = arith.divf %220, %221 : vector<8x128xf32>
    %223 = vector.extract_strided_slice %211 {offsets = [0, 128], sizes = [8, 128], strides = [1, 1]} : vector<8x384xf32> to vector<8x128xf32>
    %224 = vector.extract_strided_slice %214 {offsets = [0, 128], sizes = [8, 128], strides = [1, 1]} : vector<8x384xf32> to vector<8x128xf32>
    %225 = arith.addf %223, %224 : vector<8x128xf32>
    %226 = arith.negf %225 : vector<8x128xf32>
    %227 = math.exp %226 : vector<8x128xf32>
    %cst_56 = arith.constant 1.000000e+00 : f32
    %228 = vector.broadcast %cst_56 : f32 to vector<8x128xf32>
    %229 = arith.addf %228, %227 : vector<8x128xf32>
    %230 = arith.divf %228, %229 : vector<8x128xf32>
    %231 = vector.extract_strided_slice %211 {offsets = [0, 256], sizes = [8, 128], strides = [1, 1]} : vector<8x384xf32> to vector<8x128xf32>
    %232 = vector.extract_strided_slice %214 {offsets = [0, 256], sizes = [8, 128], strides = [1, 1]} : vector<8x384xf32> to vector<8x128xf32>
    %233 = arith.mulf %222, %232 : vector<8x128xf32>
    %234 = arith.addf %231, %233 : vector<8x128xf32>
    %235 = math.tanh %234 : vector<8x128xf32>
    %cst_57 = arith.constant 1.000000e+00 : f32
    %236 = vector.broadcast %cst_57 : f32 to vector<8x128xf32>
    %237 = arith.subf %236, %230 : vector<8x128xf32>
    %238 = arith.mulf %237, %235 : vector<8x128xf32>
    %239 = arith.mulf %230, %210 : vector<8x128xf32>
    %240 = arith.addf %238, %239 : vector<8x128xf32>
    %241 = vector.extract_strided_slice %26 {offsets = [56, 0], sizes = [8, 384], strides = [1, 1]} : vector<64x384xf32> to vector<8x384xf32>
    %cst_58 = arith.constant dense<0.000000e+00> : vector<8x384xf32>
    %242 = tpu.matmul %240, %27, %cst_58 {dimension_numbers = #tpu.dot_dimension_numbers<[1], [0], [0], [1], [0, 0, 1, 1], [], []>} : vector<8x128xf32>, vector<128x384xf32>, vector<8x384xf32> -> vector<8x384xf32>
    %243 = vector.broadcast %28 : vector<1x384xf32> to vector<8x384xf32>
    %244 = arith.addf %242, %243 : vector<8x384xf32>
    %245 = vector.extract_strided_slice %241 {offsets = [0, 0], sizes = [8, 128], strides = [1, 1]} : vector<8x384xf32> to vector<8x128xf32>
    %246 = vector.extract_strided_slice %244 {offsets = [0, 0], sizes = [8, 128], strides = [1, 1]} : vector<8x384xf32> to vector<8x128xf32>
    %247 = arith.addf %245, %246 : vector<8x128xf32>
    %248 = arith.negf %247 : vector<8x128xf32>
    %249 = math.exp %248 : vector<8x128xf32>
    %cst_59 = arith.constant 1.000000e+00 : f32
    %250 = vector.broadcast %cst_59 : f32 to vector<8x128xf32>
    %251 = arith.addf %250, %249 : vector<8x128xf32>
    %252 = arith.divf %250, %251 : vector<8x128xf32>
    %253 = vector.extract_strided_slice %241 {offsets = [0, 128], sizes = [8, 128], strides = [1, 1]} : vector<8x384xf32> to vector<8x128xf32>
    %254 = vector.extract_strided_slice %244 {offsets = [0, 128], sizes = [8, 128], strides = [1, 1]} : vector<8x384xf32> to vector<8x128xf32>
    %255 = arith.addf %253, %254 : vector<8x128xf32>
    %256 = arith.negf %255 : vector<8x128xf32>
    %257 = math.exp %256 : vector<8x128xf32>
    %cst_60 = arith.constant 1.000000e+00 : f32
    %258 = vector.broadcast %cst_60 : f32 to vector<8x128xf32>
    %259 = arith.addf %258, %257 : vector<8x128xf32>
    %260 = arith.divf %258, %259 : vector<8x128xf32>
    %261 = vector.extract_strided_slice %241 {offsets = [0, 256], sizes = [8, 128], strides = [1, 1]} : vector<8x384xf32> to vector<8x128xf32>
    %262 = vector.extract_strided_slice %244 {offsets = [0, 256], sizes = [8, 128], strides = [1, 1]} : vector<8x384xf32> to vector<8x128xf32>
    %263 = arith.mulf %252, %262 : vector<8x128xf32>
    %264 = arith.addf %261, %263 : vector<8x128xf32>
    %265 = math.tanh %264 : vector<8x128xf32>
    %cst_61 = arith.constant 1.000000e+00 : f32
    %266 = vector.broadcast %cst_61 : f32 to vector<8x128xf32>
    %267 = arith.subf %266, %260 : vector<8x128xf32>
    %268 = arith.mulf %267, %265 : vector<8x128xf32>
    %269 = arith.mulf %260, %240 : vector<8x128xf32>
    %270 = arith.addf %268, %269 : vector<8x128xf32>
    %c0_62 = arith.constant 0 : index
    %c0_63 = arith.constant 0 : index
    %c0_64 = arith.constant 0 : index
    %271 = vector.load %arg15[%c0_62, %c0_63, %c0_64] : memref<1x8x128xf32, #tpu.memory_space<vmem>>, vector<1x8x128xf32>
    %272 = vector.shape_cast %271 : vector<1x8x128xf32> to vector<8x128xf32>
    %273 = vector.shape_cast %270 : vector<8x128xf32> to vector<1x8x128xf32>
    tpu.vector_store %arg15[%c0_62, %c0_63, %c0_64], %273 {strides = array<i32>} : memref<1x8x128xf32, #tpu.memory_space<vmem>>, vector<1x8x128xf32>,
    %274 = tpu.concatenate %60, %90, %120, %150, %180, %210, %240, %270 in 0 : vector<8x128xf32>, vector<8x128xf32>, vector<8x128xf32>, vector<8x128xf32>, vector<8x128xf32>, vector<8x128xf32>, vector<8x128xf32>, vector<8x128xf32> -> vector<64x128xf32>
    %c0_65 = arith.constant 0 : index
    %c0_66 = arith.constant 0 : index
    %275 = vector.load %arg12[%c0_65, %c0_66] : memref<128x128xf32, #tpu.memory_space<vmem>>, vector<128x128xf32>
    %cst_67 = arith.constant dense<0.000000e+00> : vector<64x128xf32>
    %276 = tpu.matmul %274, %275, %cst_67 {dimension_numbers = #tpu.dot_dimension_numbers<[1], [0], [0], [1], [0, 0, 1, 1], [], []>} : vector<64x128xf32>, vector<128x128xf32>, vector<64x128xf32> -> vector<64x128xf32>
    %c0_68 = arith.constant 0 : index
    %c0_69 = arith.constant 0 : index
    %277 = vector.load %arg13[%c0_68, %c0_69] : memref<1x128xf32, #tpu.memory_space<vmem>>, vector<1x128xf32>
    %278 = vector.broadcast %277 : vector<1x128xf32> to vector<64x128xf32>
    %279 = arith.addf %276, %278 : vector<64x128xf32>
    %c0_70 = arith.constant 0 : index
    %c0_71 = arith.constant 0 : index
    %280 = vector.load %arg14[%c0_70, %c0_71] : memref<64x128xf32, #tpu.memory_space<vmem>>, vector<64x128xf32>
    tpu.vector_store %arg14[%c0_70, %c0_71], %279 {strides = array<i32>} : memref<64x128xf32, #tpu.memory_space<vmem>>, vector<64x128xf32>,
    return
  }
}

</mosaic_0001>

<llo_original>
// kernel: _lambda_.1
$region0: #{_lambda_.1}
  #allocation0 [shape = 'u32[]', space=smem, size = 0x4, offset = 0x4, fixed_abs, tag = 'smem constant byte address 0x4 - core index']
  #allocation1 [shape = 'u32[144,128]{1,0:T(1,128)}', space=vmem, size = 0x12000, scoped, tag = 'internal scratch']
  %s0 = inlined_call_operand.vmem [shape: f32[64,16], index: 0, kind: input, shape index: {}]
  %s1 = inlined_call_operand.hbm [shape: f32[16,32], index: 1, kind: input, shape index: {}]
  %s2 = inlined_call_operand.vmem [shape: f32[1,32], index: 2, kind: input, shape index: {}]
  %s3 = inlined_call_operand.hbm [shape: f32[32,32], index: 3, kind: input, shape index: {}]
  %s4 = inlined_call_operand.vmem [shape: f32[1,32], index: 4, kind: input, shape index: {}]
  %s5 = inlined_call_operand.vmem [shape: f32[32,128], index: 5, kind: input, shape index: {}]
  %s6 = inlined_call_operand.vmem [shape: f32[1,128], index: 6, kind: input, shape index: {}]
  %s7 = inlined_call_operand.hbm [shape: f32[128,384], index: 7, kind: input, shape index: {}]
  %s8 = inlined_call_operand.hbm [shape: f32[128,384], index: 8, kind: input, shape index: {}]
  %s9 = inlined_call_operand.vmem [shape: f32[1,384], index: 9, kind: input, shape index: {}]
  %s10 = inlined_call_operand.vmem [shape: f32[1,384], index: 10, kind: input, shape index: {}]
  %s11 = inlined_call_operand.vmem [shape: f32[1,8,128], index: 11, kind: input, shape index: {}]
  %s12 = inlined_call_operand.vmem [shape: f32[128,128], index: 12, kind: input, shape index: {}]
  %s13 = inlined_call_operand.vmem [shape: f32[1,128], index: 13, kind: input, shape index: {}]
  %s14 = inlined_call_operand.vmem [shape: f32[64,128], index: 14, kind: output, shape index: {0}]
  %s15 = inlined_call_operand.vmem [shape: f32[1,8,128], index: 15, kind: output, shape index: {1}]
  %16 = xla_tuple %s14, %s15
  %s17 = sld [smem:[#allocation0]]
  $region90: #{_lambda_.1} parent=0
    _
  %s19 = ssub.s32 1, %s17
  %s20 = scalar_select 0, %s19, %s17
  $region1: #{_lambda_.1} parent=0
    #allocation2 [shape = 'u8[8192]{0}', space=vmem, size = 0x2000, scoped, tag = 'input window, operand 1, single buffered']
    #allocation3 [shape = 's32[1]{0}', space=sflag, size = 0x4, scoped, tag = 'scoped memory for _lambda_.1']
    #allocation4 [shape = 'u8[16384]{0}', space=vmem, size = 0x4000, scoped, tag = 'input window, operand 3, single buffered']
    #allocation5 [shape = 's32[1]{0}', space=sflag, size = 0x4, scoped, tag = 'scoped memory for _lambda_.1']
    #allocation6 [shape = 'u8[196608]{0}', space=vmem, size = 0x30000, scoped, tag = 'input window, operand 7, single buffered']
    #allocation7 [shape = 'u8[196608]{0}', space=vmem, size = 0x30000, scoped, tag = 'input window, operand 8, single buffered']
    #allocation8 [shape = 's32[1]{0}', space=sflag, size = 0x4, scoped, tag = 'scoped memory for _lambda_.1']
    %21 = vsyncpa [#allocation3], 0
    %22 = vsyncpa [#allocation5], 0
    %23 = vsyncpa [#allocation8], 0
    // Predicated region
    $region2: #{_lambda_.1} parent=1 // pred_check
      _
    $region3: #{_lambda_.1} parent=1 // pred_check_branch
      %25 = sbr.rel (0) target = $region5
    $region4: #{_lambda_.1} parent=1 // pred_region
      _
    $region5: #{_lambda_.1} parent=1 // pred_fallthru
      _
    // Predicated region
    $region6: #{_lambda_.1} parent=1 // pred_check
      _
    $region7: #{_lambda_.1} parent=1 // pred_check_branch
      %27 = sbr.rel (0) target = $region9
    $region8: #{_lambda_.1} parent=1 // pred_region
      %s29 = ssub.s32 256, 256
      %30 = vsyncadd [#allocation3], %s29
      %s31 = sshll.u32 [#allocation2], 4
      %s32 = int_to_ptr.vmem [resolvable:$true] %s31
      %37 = dma.hbm_to_vmem [thread:$0]  %s1, 256, %s32, [#allocation3], 128, 128, 8
    $region9: #{_lambda_.1} parent=1 // pred_fallthru
      _
    // Predicated region
    $region10: #{_lambda_.1} parent=1 // pred_check
      _
    $region11: #{_lambda_.1} parent=1 // pred_check_branch
      %39 = sbr.rel (0) target = $region13
    $region12: #{_lambda_.1} parent=1 // pred_region
      _
    $region13: #{_lambda_.1} parent=1 // pred_fallthru
      _
    // Predicated region
    $region14: #{_lambda_.1} parent=1 // pred_check
      _
    $region15: #{_lambda_.1} parent=1 // pred_check_branch
      %41 = sbr.rel (0) target = $region17
    $region16: #{_lambda_.1} parent=1 // pred_region
      %s43 = ssub.s32 512, 512
      %44 = vsyncadd [#allocation5], %s43
      %s45 = sshll.u32 [#allocation4], 4
      %s46 = int_to_ptr.vmem [resolvable:$true] %s45
      %51 = dma.hbm_to_vmem [thread:$0]  %s3, 512, %s46, [#allocation5], 128, 128, 8
    $region17: #{_lambda_.1} parent=1 // pred_fallthru
      _
    // Predicated region
    $region18: #{_lambda_.1} parent=1 // pred_check
      _
    $region19: #{_lambda_.1} parent=1 // pred_check_branch
      %53 = sbr.rel (0) target = $region21
    $region20: #{_lambda_.1} parent=1 // pred_region
      _
    $region21: #{_lambda_.1} parent=1 // pred_fallthru
      _
    // Predicated region
    $region22: #{_lambda_.1} parent=1 // pred_check
      _
    $region23: #{_lambda_.1} parent=1 // pred_check_branch
      %55 = sbr.rel (0) target = $region25
    $region24: #{_lambda_.1} parent=1 // pred_region
      _
    $region25: #{_lambda_.1} parent=1 // pred_fallthru
      _
    // Predicated region
    $region26: #{_lambda_.1} parent=1 // pred_check
      _
    $region27: #{_lambda_.1} parent=1 // pred_check_branch
      %57 = sbr.rel (0) target = $region29
    $region28: #{_lambda_.1} parent=1 // pred_region
      _
    $region29: #{_lambda_.1} parent=1 // pred_fallthru
      _
    // Predicated region
    $region30: #{_lambda_.1} parent=1 // pred_check
      _
    $region31: #{_lambda_.1} parent=1 // pred_check_branch
      %59 = sbr.rel (0) target = $region33
    $region32: #{_lambda_.1} parent=1 // pred_region
      %s61 = ssub.s32 6144, 6144
      %62 = vsyncadd [#allocation5], %s61
      %s63 = sshll.u32 [#allocation6], 4
      %s64 = int_to_ptr.vmem [resolvable:$true] %s63
      %69 = dma.hbm_to_vmem [thread:$0]  %s7, 6144, %s64, [#allocation5], 384, 384, 24
    $region33: #{_lambda_.1} parent=1 // pred_fallthru
      _
    // Predicated region
    $region34: #{_lambda_.1} parent=1 // pred_check
      _
    $region35: #{_lambda_.1} parent=1 // pred_check_branch
      %71 = sbr.rel (0) target = $region37
    $region36: #{_lambda_.1} parent=1 // pred_region
      %s73 = ssub.s32 6144, 6144
      %74 = vsyncadd [#allocation8], %s73
      %s75 = sshll.u32 [#allocation7], 4
      %s76 = int_to_ptr.vmem [resolvable:$true] %s75
      %81 = dma.hbm_to_vmem [thread:$0]  %s8, 6144, %s76, [#allocation8], 384, 384, 24
    $region37: #{_lambda_.1} parent=1 // pred_fallthru
      _
    // Predicated region
    $region38: #{_lambda_.1} parent=1 // pred_check
      _
    $region39: #{_lambda_.1} parent=1 // pred_check_branch
      %83 = sbr.rel (0) target = $region41
    $region40: #{_lambda_.1} parent=1 // pred_region
      _
    $region41: #{_lambda_.1} parent=1 // pred_fallthru
      _
    // Predicated region
    $region42: #{_lambda_.1} parent=1 // pred_check
      _
    $region43: #{_lambda_.1} parent=1 // pred_check_branch
      %85 = sbr.rel (0) target = $region45
    $region44: #{_lambda_.1} parent=1 // pred_region
      _
    $region45: #{_lambda_.1} parent=1 // pred_fallthru
      _
    // Predicated region
    $region46: #{_lambda_.1} parent=1 // pred_check
      _
    $region47: #{_lambda_.1} parent=1 // pred_check_branch
      %87 = sbr.rel (0) target = $region49
    $region48: #{_lambda_.1} parent=1 // pred_region
      _
    $region49: #{_lambda_.1} parent=1 // pred_fallthru
      _
    // Predicated region
    $region50: #{_lambda_.1} parent=1 // pred_check
      _
    $region51: #{_lambda_.1} parent=1 // pred_check_branch
      %89 = sbr.rel (0) target = $region53
    $region52: #{_lambda_.1} parent=1 // pred_region
      _
    $region53: #{_lambda_.1} parent=1 // pred_fallthru
      _
    // Predicated region
    $region54: #{_lambda_.1} parent=1 // pred_check
      _
    $region55: #{_lambda_.1} parent=1 // pred_check_branch
      %91 = sbr.rel (0) target = $region57
    $region56: #{_lambda_.1} parent=1 // pred_region
      _
    $region57: #{_lambda_.1} parent=1 // pred_fallthru
      _
    // Predicated region
    $region58: #{_lambda_.1} parent=1 // pred_check
      _
    $region59: #{_lambda_.1} parent=1 // pred_check_branch
      %93 = sbr.rel (0) target = $region61
    $region60: #{_lambda_.1} parent=1 // pred_region
      %94 = dma.done [#allocation3], 256
    $region61: #{_lambda_.1} parent=1 // pred_fallthru
      _
    // Predicated region
    $region62: #{_lambda_.1} parent=1 // pred_check
      _
    $region63: #{_lambda_.1} parent=1 // pred_check_branch
      %96 = sbr.rel (0) target = $region65
    $region64: #{_lambda_.1} parent=1 // pred_region
      %97 = dma.done [#allocation5], 512
    $region65: #{_lambda_.1} parent=1 // pred_fallthru
      _
    // Predicated region
    $region66: #{_lambda_.1} parent=1 // pred_check
      _
    $region67: #{_lambda_.1} parent=1 // pred_check_branch
      %99 = sbr.rel (0) target = $region69
    $region68: #{_lambda_.1} parent=1 // pred_region
      %100 = dma.done [#allocation5], 6144
    $region69: #{_lambda_.1} parent=1 // pred_fallthru
      _
    // Predicated region
    $region70: #{_lambda_.1} parent=1 // pred_check
      _
    $region71: #{_lambda_.1} parent=1 // pred_check_branch
      %102 = sbr.rel (0) target = $region73
    $region72: #{_lambda_.1} parent=1 // pred_region
      %103 = dma.done [#allocation8], 6144
    $region73: #{_lambda_.1} parent=1 // pred_fallthru
      _
    %v104 = vld [vmem:[%s0] sm:$0xff]
    %v105 = vld [vmem:[%s0 + $0x8] sm:$0xff]
    %v106 = vld [vmem:[%s0 + $0x10] sm:$0xff]
    %v107 = vld [vmem:[%s0 + $0x18] sm:$0xff]
    %v108 = vld [vmem:[%s0 + $0x20] sm:$0xff]
    %v109 = vld [vmem:[%s0 + $0x28] sm:$0xff]
    %v110 = vld [vmem:[%s0 + $0x30] sm:$0xff]
    %v111 = vld [vmem:[%s0 + $0x38] sm:$0xff]
    %v112 = vld [vmem:[#allocation2] sm:$0xff]
    %v113 = vld [vmem:[#allocation2 + $0x8] sm:$0xff]
    %v114 = vld [vmem:[%s2] sm:$0x1]
    %v116 = vlaneseq
    %v117 = vshrl.u32 %v116, 7
    %v118 = vsub.s32 0, %v117
    %v119 = vrot.slane %v114, %v118
    %vm121 = vcmask 130048
    %v123 = vsel %vm121, %v104, 0
    %v126 = vsel %vm121, %v105, 0
    %v129 = vsel %vm121, %v106, 0
    %v132 = vsel %vm121, %v107, 0
    %v135 = vsel %vm121, %v108, 0
    %v138 = vsel %vm121, %v109, 0
    %v141 = vsel %vm121, %v110, 0
    %v144 = vsel %vm121, %v111, 0
    %146 = vmatprep.subr.mxu0 0.0
    %147 = vmatpush1.msra.mxu0 %v112
    %148 = vmatprep.subr.mxu0 0.0
    %149 = vmatpush1.msra.mxu0 %v113
    %150 = vmatprep.subr.mxu0 0.0
    %151 = vmatpush1.msra.mxu0 0.0
    %152 = vmatprep.subr.mxu0 0.0
    %153 = vmatpush1.msra.mxu0 0.0
    %154 = vmatprep.subr.mxu0 0.0
    %155 = vmatpush1.msra.mxu0 0.0
    %156 = vmatprep.subr.mxu0 0.0
    %157 = vmatpush1.msra.mxu0 0.0
    %158 = vmatprep.subr.mxu0 0.0
    %159 = vmatpush1.msra.mxu0 0.0
    %160 = vmatprep.subr.mxu0 0.0
    %161 = vmatpush1.msra.mxu0 0.0
    %162 = vmatprep.subr.mxu0 0.0
    %163 = vmatpush1.msra.mxu0 0.0
    %164 = vmatprep.subr.mxu0 0.0
    %165 = vmatpush1.msra.mxu0 0.0
    %166 = vmatprep.subr.mxu0 0.0
    %167 = vmatpush1.msra.mxu0 0.0
    %168 = vmatprep.subr.mxu0 0.0
    %169 = vmatpush1.msra.mxu0 0.0
    %170 = vmatprep.subr.mxu0 0.0
    %171 = vmatpush1.msra.mxu0 0.0
    %172 = vmatprep.subr.mxu0 0.0
    %173 = vmatpush1.msra.mxu0 0.0
    %174 = vmatprep.subr.mxu0 0.0
    %175 = vmatpush1.msra.mxu0 0.0
    %176 = vmatprep.subr.mxu0 0.0
    %177 = vmatpush1.msra.mxu0 0.0
    %178 = vmatprep.subr.mxu0 0.0
    %179 = vmatpush1.msra.mxu0 0.0
    %180 = vmatprep.subr.mxu0 0.0
    %181 = vmatpush1.msra.mxu0 0.0
    %182 = vmatprep.subr.mxu0 0.0
    %183 = vmatpush1.msra.mxu0 0.0
    %184 = vmatprep.subr.mxu0 0.0
    %185 = vmatpush1.msra.mxu0 0.0
    %186 = vmatprep.subr.mxu0 0.0
    %187 = vmatpush1.msra.mxu0 0.0
    %188 = vmatprep.subr.mxu0 0.0
    %189 = vmatpush1.msra.mxu0 0.0
    %190 = vmatprep.subr.mxu0 0.0
    %191 = vmatpush1.msra.mxu0 0.0
    %192 = vmatprep.subr.mxu0 0.0
    %193 = vmatpush1.msra.mxu0 0.0
    %194 = vmatprep.subr.mxu0 0.0
    %195 = vmatpush1.msra.mxu0 0.0
    %196 = vmatprep.subr.mxu0 0.0
    %197 = vmatpush1.msra.mxu0 0.0
    %198 = vmatprep.subr.mxu0 0.0
    %199 = vmatpush1.msra.mxu0 0.0
    %200 = vmatprep.subr.mxu0 0.0
    %201 = vmatpush1.msra.mxu0 0.0
    %202 = vmatprep.subr.mxu0 0.0
    %203 = vmatpush1.msra.mxu0 0.0
    %204 = vmatprep.subr.mxu0 0.0
    %205 = vmatpush1.msra.mxu0 0.0
    %206 = vmatprep.subr.mxu0 0.0
    %207 = vmatpush1.msra.mxu0 0.0
    %208 = vmatprep.subr.mxu0 0.0
    %209 = vmatpush1.msra.mxu0 0.0
    %210 = vmatprep.mubr.f32.mxu0 0.0
    %211 = vmatmul.mubr.f32.gmra.mrb[0].mxu0 %v123
    %v212 = vpop.f32.mrb[0].mxu0
    %v213 = vadd.f32 %v119, %v212
    %v214 = vpop.f32.mrb[0].mxu0
    %215 = vmatprep.mubr.f32.mxu0 0.0
    %216 = vmatmul.mubr.f32.gmra.mrb[0].mxu0 %v126
    %v217 = vpop.f32.mrb[0].mxu0
    %v218 = vadd.f32 %v119, %v217
    %v219 = vpop.f32.mrb[0].mxu0
    %220 = vmatprep.mubr.f32.mxu0 0.0
    %221 = vmatmul.mubr.f32.gmra.mrb[0].mxu0 %v129
    %v222 = vpop.f32.mrb[0].mxu0
    %v223 = vadd.f32 %v119, %v222
    %v224 = vpop.f32.mrb[0].mxu0
    %225 = vmatprep.mubr.f32.mxu0 0.0
    %226 = vmatmul.mubr.f32.gmra.mrb[0].mxu0 %v132
    %v227 = vpop.f32.mrb[0].mxu0
    %v228 = vadd.f32 %v119, %v227
    %v229 = vpop.f32.mrb[0].mxu0
    %230 = vmatprep.mubr.f32.mxu0 0.0
    %231 = vmatmul.mubr.f32.gmra.mrb[0].mxu0 %v135
    %v232 = vpop.f32.mrb[0].mxu0
    %v233 = vadd.f32 %v119, %v232
    %v234 = vpop.f32.mrb[0].mxu0
    %235 = vmatprep.mubr.f32.mxu0 0.0
    %236 = vmatmul.mubr.f32.gmra.mrb[0].mxu0 %v138
    %v237 = vpop.f32.mrb[0].mxu0
    %v238 = vadd.f32 %v119, %v237
    %v239 = vpop.f32.mrb[0].mxu0
    %240 = vmatprep.mubr.f32.mxu0 0.0
    %241 = vmatmul.mubr.f32.gmra.mrb[0].mxu0 %v141
    %v242 = vpop.f32.mrb[0].mxu0
    %v243 = vadd.f32 %v119, %v242
    %v244 = vpop.f32.mrb[0].mxu0
    %245 = vmatprep.mubr.f32.mxu0 0.0
    %246 = vmatmul.mubr.f32.gmra.mrb[0].mxu0 %v144
    %v247 = vpop.f32.mrb[0].mxu0
    %v248 = vadd.f32 %v119, %v247
    %v249 = vpop.f32.mrb[0].mxu0
    %250 = vdwg.mxu0
    %v251 = vmax.f32 %v213, 0.0
    %v252 = vmax.f32 %v218, 0.0
    %v253 = vmax.f32 %v223, 0.0
    %v254 = vmax.f32 %v228, 0.0
    %v255 = vmax.f32 %v233, 0.0
    %v256 = vmax.f32 %v238, 0.0
    %v257 = vmax.f32 %v243, 0.0
    %v258 = vmax.f32 %v248, 0.0
    %v259 = vld [vmem:[#allocation4] sm:$0xff]
    %v260 = vld [vmem:[#allocation4 + $0x8] sm:$0xff]
    %v261 = vld [vmem:[#allocation4 + $0x10] sm:$0xff]
    %v262 = vld [vmem:[#allocation4 + $0x18] sm:$0xff]
    %v263 = vld [vmem:[%s4] sm:$0x1]
    %v265 = vlaneseq
    %v266 = vshrl.u32 %v265, 7
    %v267 = vsub.s32 0, %v266
    %v268 = vrot.slane %v263, %v267
    %vm270 = vcmask 261120
    %v272 = vsel %vm270, %v251, 0
    %v275 = vsel %vm270, %v252, 0
    %v278 = vsel %vm270, %v253, 0
    %v281 = vsel %vm270, %v254, 0
    %v284 = vsel %vm270, %v255, 0
    %v287 = vsel %vm270, %v256, 0
    %v290 = vsel %vm270, %v257, 0
    %v293 = vsel %vm270, %v258, 0
    %295 = vmatprep.subr.mxu0 0.0
    %296 = vmatpush1.msra.mxu0 %v259
    %297 = vmatprep.subr.mxu0 0.0
    %298 = vmatpush1.msra.mxu0 %v260
    %299 = vmatprep.subr.mxu0 0.0
    %300 = vmatpush1.msra.mxu0 %v261
    %301 = vmatprep.subr.mxu0 0.0
    %302 = vmatpush1.msra.mxu0 %v262
    %303 = vmatprep.subr.mxu0 0.0
    %304 = vmatpush1.msra.mxu0 0.0
    %305 = vmatprep.subr.mxu0 0.0
    %306 = vmatpush1.msra.mxu0 0.0
    %307 = vmatprep.subr.mxu0 0.0
    %308 = vmatpush1.msra.mxu0 0.0
    %309 = vmatprep.subr.mxu0 0.0
    %310 = vmatpush1.msra.mxu0 0.0
    %311 = vmatprep.subr.mxu0 0.0
    %312 = vmatpush1.msra.mxu0 0.0
    %313 = vmatprep.subr.mxu0 0.0
    %314 = vmatpush1.msra.mxu0 0.0
    %315 = vmatprep.subr.mxu0 0.0
    %316 = vmatpush1.msra.mxu0 0.0
    %317 = vmatprep.subr.mxu0 0.0
    %318 = vmatpush1.msra.mxu0 0.0
    %319 = vmatprep.subr.mxu0 0.0
    %320 = vmatpush1.msra.mxu0 0.0
    %321 = vmatprep.subr.mxu0 0.0
    %322 = vmatpush1.msra.mxu0 0.0
    %323 = vmatprep.subr.mxu0 0.0
    %324 = vmatpush1.msra.mxu0 0.0
    %325 = vmatprep.subr.mxu0 0.0
    %326 = vmatpush1.msra.mxu0 0.0
    %327 = vmatprep.subr.mxu0 0.0
    %328 = vmatpush1.msra.mxu0 0.0
    %329 = vmatprep.subr.mxu0 0.0
    %330 = vmatpush1.msra.mxu0 0.0
    %331 = vmatprep.subr.mxu0 0.0
    %332 = vmatpush1.msra.mxu0 0.0
    %333 = vmatprep.subr.mxu0 0.0
    %334 = vmatpush1.msra.mxu0 0.0
    %335 = vmatprep.subr.mxu0 0.0
    %336 = vmatpush1.msra.mxu0 0.0
    %337 = vmatprep.subr.mxu0 0.0
    %338 = vmatpush1.msra.mxu0 0.0
    %339 = vmatprep.subr.mxu0 0.0
    %340 = vmatpush1.msra.mxu0 0.0
    %341 = vmatprep.subr.mxu0 0.0
    %342 = vmatpush1.msra.mxu0 0.0
    %343 = vmatprep.subr.mxu0 0.0
    %344 = vmatpush1.msra.mxu0 0.0
    %345 = vmatprep.subr.mxu0 0.0
    %346 = vmatpush1.msra.mxu0 0.0
    %347 = vmatprep.subr.mxu0 0.0
    %348 = vmatpush1.msra.mxu0 0.0
    %349 = vmatprep.subr.mxu0 0.0
    %350 = vmatpush1.msra.mxu0 0.0
    %351 = vmatprep.subr.mxu0 0.0
    %352 = vmatpush1.msra.mxu0 0.0
    %353 = vmatprep.subr.mxu0 0.0
    %354 = vmatpush1.msra.mxu0 0.0
    %355 = vmatprep.subr.mxu0 0.0
    %356 = vmatpush1.msra.mxu0 0.0
    %357 = vmatprep.subr.mxu0 0.0
    %358 = vmatpush1.msra.mxu0 0.0
    %359 = vmatprep.mubr.f32.mxu0 0.0
    %360 = vmatmul.mubr.f32.gmra.mrb[0].mxu0 %v272
    %v361 = vpop.f32.mrb[0].mxu0
    %v362 = vadd.f32 %v268, %v361
    %v363 = vpop.f32.mrb[0].mxu0
    %364 = vmatprep.mubr.f32.mxu0 0.0
    %365 = vmatmul.mubr.f32.gmra.mrb[0].mxu0 %v275
    %v366 = vpop.f32.mrb[0].mxu0
    %v367 = vadd.f32 %v268, %v366
    %v368 = vpop.f32.mrb[0].mxu0
    %369 = vmatprep.mubr.f32.mxu0 0.0
    %370 = vmatmul.mubr.f32.gmra.mrb[0].mxu0 %v278
    %v371 = vpop.f32.mrb[0].mxu0
    %v372 = vadd.f32 %v268, %v371
    %v373 = vpop.f32.mrb[0].mxu0
    %374 = vmatprep.mubr.f32.mxu0 0.0
    %375 = vmatmul.mubr.f32.gmra.mrb[0].mxu0 %v281
    %v376 = vpop.f32.mrb[0].mxu0
    %v377 = vadd.f32 %v268, %v376
    %v378 = vpop.f32.mrb[0].mxu0
    %379 = vmatprep.mubr.f32.mxu0 0.0
    %380 = vmatmul.mubr.f32.gmra.mrb[0].mxu0 %v284
    %v381 = vpop.f32.mrb[0].mxu0
    %v382 = vadd.f32 %v268, %v381
    %v383 = vpop.f32.mrb[0].mxu0
    %384 = vmatprep.mubr.f32.mxu0 0.0
    %385 = vmatmul.mubr.f32.gmra.mrb[0].mxu0 %v287
    %v386 = vpop.f32.mrb[0].mxu0
    %v387 = vadd.f32 %v268, %v386
    %v388 = vpop.f32.mrb[0].mxu0
    %389 = vmatprep.mubr.f32.mxu0 0.0
    %390 = vmatmul.mubr.f32.gmra.mrb[0].mxu0 %v290
    %v391 = vpop.f32.mrb[0].mxu0
    %v392 = vadd.f32 %v268, %v391
    %v393 = vpop.f32.mrb[0].mxu0
    %394 = vmatprep.mubr.f32.mxu0 0.0
    %395 = vmatmul.mubr.f32.gmra.mrb[0].mxu0 %v293
    %v396 = vpop.f32.mrb[0].mxu0
    %v397 = vadd.f32 %v268, %v396
    %v398 = vpop.f32.mrb[0].mxu0
    %399 = vdwg.mxu0
    %v400 = vmax.f32 %v362, 0.0
    %v401 = vmax.f32 %v367, 0.0
    %v402 = vmax.f32 %v372, 0.0
    %v403 = vmax.f32 %v377, 0.0
    %v404 = vmax.f32 %v382, 0.0
    %v405 = vmax.f32 %v387, 0.0
    %v406 = vmax.f32 %v392, 0.0
    %v407 = vmax.f32 %v397, 0.0
    %v408 = vld [vmem:[%s5] sm:$0xff]
    %v409 = vld [vmem:[%s5 + $0x8] sm:$0xff]
    %v410 = vld [vmem:[%s5 + $0x10] sm:$0xff]
    %v411 = vld [vmem:[%s5 + $0x18] sm:$0xff]
    %v412 = vld [vmem:[%s6] sm:$0x1]
    %v414 = vlaneseq
    %v415 = vshrl.u32 %v414, 7
    %v416 = vsub.s32 0, %v415
    %v417 = vrot.slane %v412, %v416
    %v420 = vsel %vm270, %v400, 0
    %v423 = vsel %vm270, %v401, 0
    %v426 = vsel %vm270, %v402, 0
    %v429 = vsel %vm270, %v403, 0
    %v432 = vsel %vm270, %v404, 0
    %v435 = vsel %vm270, %v405, 0
    %v438 = vsel %vm270, %v406, 0
    %v441 = vsel %vm270, %v407, 0
    %443 = vmatprep.subr.mxu0 0.0
    %444 = vmatpush1.msra.mxu0 %v408
    %445 = vmatprep.subr.mxu0 0.0
    %446 = vmatpush1.msra.mxu0 %v409
    %447 = vmatprep.subr.mxu0 0.0
    %448 = vmatpush1.msra.mxu0 %v410
    %449 = vmatprep.subr.mxu0 0.0
    %450 = vmatpush1.msra.mxu0 %v411
    %451 = vmatprep.subr.mxu0 0.0
    %452 = vmatpush1.msra.mxu0 0.0
    %453 = vmatprep.subr.mxu0 0.0
    %454 = vmatpush1.msra.mxu0 0.0
    %455 = vmatprep.subr.mxu0 0.0
    %456 = vmatpush1.msra.mxu0 0.0
    %457 = vmatprep.subr.mxu0 0.0
    %458 = vmatpush1.msra.mxu0 0.0
    %459 = vmatprep.subr.mxu0 0.0
    %460 = vmatpush1.msra.mxu0 0.0
    %461 = vmatprep.subr.mxu0 0.0
    %462 = vmatpush1.msra.mxu0 0.0
    %463 = vmatprep.subr.mxu0 0.0
    %464 = vmatpush1.msra.mxu0 0.0
    %465 = vmatprep.subr.mxu0 0.0
    %466 = vmatpush1.msra.mxu0 0.0
    %467 = vmatprep.subr.mxu0 0.0
    %468 = vmatpush1.msra.mxu0 0.0
    %469 = vmatprep.subr.mxu0 0.0
    %470 = vmatpush1.msra.mxu0 0.0
    %471 = vmatprep.subr.mxu0 0.0
    %472 = vmatpush1.msra.mxu0 0.0
    %473 = vmatprep.subr.mxu0 0.0
    %474 = vmatpush1.msra.mxu0 0.0
    %475 = vmatprep.subr.mxu0 0.0
    %476 = vmatpush1.msra.mxu0 0.0
    %477 = vmatprep.subr.mxu0 0.0
    %478 = vmatpush1.msra.mxu0 0.0
    %479 = vmatprep.subr.mxu0 0.0
    %480 = vmatpush1.msra.mxu0 0.0
    %481 = vmatprep.subr.mxu0 0.0
    %482 = vmatpush1.msra.mxu0 0.0
    %483 = vmatprep.subr.mxu0 0.0
    %484 = vmatpush1.msra.mxu0 0.0
    %485 = vmatprep.subr.mxu0 0.0
    %486 = vmatpush1.msra.mxu0 0.0
    %487 = vmatprep.subr.mxu0 0.0
    %488 = vmatpush1.msra.mxu0 0.0
    %489 = vmatprep.subr.mxu0 0.0
    %490 = vmatpush1.msra.mxu0 0.0
    %491 = vmatprep.subr.mxu0 0.0
    %492 = vmatpush1.msra.mxu0 0.0
    %493 = vmatprep.subr.mxu0 0.0
    %494 = vmatpush1.msra.mxu0 0.0
    %495 = vmatprep.subr.mxu0 0.0
    %496 = vmatpush1.msra.mxu0 0.0
    %497 = vmatprep.subr.mxu0 0.0
    %498 = vmatpush1.msra.mxu0 0.0
    %499 = vmatprep.subr.mxu0 0.0
    %500 = vmatpush1.msra.mxu0 0.0
    %501 = vmatprep.subr.mxu0 0.0
    %502 = vmatpush1.msra.mxu0 0.0
    %503 = vmatprep.subr.mxu0 0.0
    %504 = vmatpush1.msra.mxu0 0.0
    %505 = vmatprep.subr.mxu0 0.0
    %506 = vmatpush1.msra.mxu0 0.0
    %507 = vmatprep.mubr.f32.mxu0 0.0
    %508 = vmatmul.mubr.f32.gmra.mrb[0].mxu0 %v420
    %v509 = vpop.f32.mrb[0].mxu0
    %v510 = vadd.f32 %v417, %v509
    %v511 = vpop.f32.mrb[0].mxu0
    %512 = vmatprep.mubr.f32.mxu0 0.0
    %513 = vmatmul.mubr.f32.gmra.mrb[0].mxu0 %v423
    %v514 = vpop.f32.mrb[0].mxu0
    %v515 = vadd.f32 %v417, %v514
    %v516 = vpop.f32.mrb[0].mxu0
    %517 = vmatprep.mubr.f32.mxu0 0.0
    %518 = vmatmul.mubr.f32.gmra.mrb[0].mxu0 %v426
    %v519 = vpop.f32.mrb[0].mxu0
    %v520 = vadd.f32 %v417, %v519
    %v521 = vpop.f32.mrb[0].mxu0
    %522 = vmatprep.mubr.f32.mxu0 0.0
    %523 = vmatmul.mubr.f32.gmra.mrb[0].mxu0 %v429
    %v524 = vpop.f32.mrb[0].mxu0
    %v525 = vadd.f32 %v417, %v524
    %v526 = vpop.f32.mrb[0].mxu0
    %527 = vmatprep.mubr.f32.mxu0 0.0
    %528 = vmatmul.mubr.f32.gmra.mrb[0].mxu0 %v432
    %v529 = vpop.f32.mrb[0].mxu0
    %v530 = vadd.f32 %v417, %v529
    %v531 = vpop.f32.mrb[0].mxu0
    %532 = vmatprep.mubr.f32.mxu0 0.0
    %533 = vmatmul.mubr.f32.gmra.mrb[0].mxu0 %v435
    %v534 = vpop.f32.mrb[0].mxu0
    %v535 = vadd.f32 %v417, %v534
    %v536 = vpop.f32.mrb[0].mxu0
    %537 = vmatprep.mubr.f32.mxu0 0.0
    %538 = vmatmul.mubr.f32.gmra.mrb[0].mxu0 %v438
    %v539 = vpop.f32.mrb[0].mxu0
    %v540 = vadd.f32 %v417, %v539
    %v541 = vpop.f32.mrb[0].mxu0
    %542 = vmatprep.mubr.f32.mxu0 0.0
    %543 = vmatmul.mubr.f32.gmra.mrb[0].mxu0 %v441
    %v544 = vpop.f32.mrb[0].mxu0
    %v545 = vadd.f32 %v417, %v544
    %v546 = vpop.f32.mrb[0].mxu0
    %547 = vdwg.mxu0
    %v548 = vmax.f32 %v510, 0.0
    %v549 = vmax.f32 %v515, 0.0
    %v550 = vmax.f32 %v520, 0.0
    %v551 = vmax.f32 %v525, 0.0
    %v552 = vmax.f32 %v530, 0.0
    %v553 = vmax.f32 %v535, 0.0
    %v554 = vmax.f32 %v540, 0.0
    %v555 = vmax.f32 %v545, 0.0
    %v556 = vld [vmem:[#allocation6] sm:$0xff]
    %v557 = vld [vmem:[#allocation6 + $0x8] sm:$0xff]
    %v558 = vld [vmem:[#allocation6 + $0x10] sm:$0xff]
    %v559 = vld [vmem:[#allocation6 + $0x18] sm:$0xff]
    %v560 = vld [vmem:[#allocation6 + $0x20] sm:$0xff]
    %v561 = vld [vmem:[#allocation6 + $0x28] sm:$0xff]
    %v562 = vld [vmem:[#allocation6 + $0x30] sm:$0xff]
    %v563 = vld [vmem:[#allocation6 + $0x38] sm:$0xff]
    %v564 = vld [vmem:[#allocation6 + $0x40] sm:$0xff]
    %v565 = vld [vmem:[#allocation6 + $0x48] sm:$0xff]
    %v566 = vld [vmem:[#allocation6 + $0x50] sm:$0xff]
    %v567 = vld [vmem:[#allocation6 + $0x58] sm:$0xff]
    %v568 = vld [vmem:[#allocation6 + $0x60] sm:$0xff]
    %v569 = vld [vmem:[#allocation6 + $0x68] sm:$0xff]
    %v570 = vld [vmem:[#allocation6 + $0x70] sm:$0xff]
    %v571 = vld [vmem:[#allocation6 + $0x78] sm:$0xff]
    %v572 = vld [vmem:[#allocation6 + $0x80] sm:$0xff]
    %v573 = vld [vmem:[#allocation6 + $0x88] sm:$0xff]
    %v574 = vld [vmem:[#allocation6 + $0x90] sm:$0xff]
    %v575 = vld [vmem:[#allocation6 + $0x98] sm:$0xff]
    %v576 = vld [vmem:[#allocation6 + $0xa0] sm:$0xff]
    %v577 = vld [vmem:[#allocation6 + $0xa8] sm:$0xff]
    %v578 = vld [vmem:[#allocation6 + $0xb0] sm:$0xff]
    %v579 = vld [vmem:[#allocation6 + $0xb8] sm:$0xff]
    %v580 = vld [vmem:[#allocation6 + $0xc0] sm:$0xff]
    %v581 = vld [vmem:[#allocation6 + $0xc8] sm:$0xff]
    %v582 = vld [vmem:[#allocation6 + $0xd0] sm:$0xff]
    %v583 = vld [vmem:[#allocation6 + $0xd8] sm:$0xff]
    %v584 = vld [vmem:[#allocation6 + $0xe0] sm:$0xff]
    %v585 = vld [vmem:[#allocation6 + $0xe8] sm:$0xff]
    %v586 = vld [vmem:[#allocation6 + $0xf0] sm:$0xff]
    %v587 = vld [vmem:[#allocation6 + $0xf8] sm:$0xff]
    %v588 = vld [vmem:[#allocation6 + $0x100] sm:$0xff]
    %v589 = vld [vmem:[#allocation6 + $0x108] sm:$0xff]
    %v590 = vld [vmem:[#allocation6 + $0x110] sm:$0xff]
    %v591 = vld [vmem:[#allocation6 + $0x118] sm:$0xff]
    %v592 = vld [vmem:[#allocation6 + $0x120] sm:$0xff]
    %v593 = vld [vmem:[#allocation6 + $0x128] sm:$0xff]
    %v594 = vld [vmem:[#allocation6 + $0x130] sm:$0xff]
    %v595 = vld [vmem:[#allocation6 + $0x138] sm:$0xff]
    %v596 = vld [vmem:[#allocation6 + $0x140] sm:$0xff]
    %v597 = vld [vmem:[#allocation6 + $0x148] sm:$0xff]
    %v598 = vld [vmem:[#allocation6 + $0x150] sm:$0xff]
    %v599 = vld [vmem:[#allocation6 + $0x158] sm:$0xff]
    %v600 = vld [vmem:[#allocation6 + $0x160] sm:$0xff]
    %v601 = vld [vmem:[#allocation6 + $0x168] sm:$0xff]
    %v602 = vld [vmem:[#allocation6 + $0x170] sm:$0xff]
    %v603 = vld [vmem:[#allocation6 + $0x178] sm:$0xff]
    %v604 = vld [vmem:[%s9] sm:$0x7]
    %v606 = vlaneseq
    %v607 = vshrl.u32 %v606, 7
    %v608 = vsub.s32 0, %v607
    %v609 = vrot.slane %v604, %v608
    %v610 = vlaneseq
    %v611 = vshrl.u32 %v610, 7
    %v612 = vsub.s32 1, %v611
    %v613 = vrot.slane %v604, %v612
    %v614 = vlaneseq
    %v615 = vshrl.u32 %v614, 7
    %v616 = vsub.s32 2, %v615
    %v617 = vrot.slane %v604, %v616
    %621 = vmatprep.subr.mxu0 %v557
    %622 = vmatpush1.msra.mxu0 %v556
    %623 = vmatprep.subr.mxu0 %v560
    %624 = vmatpush1.msra.mxu0 %v559
    %625 = vmatprep.subr.mxu0 %v563
    %626 = vmatpush1.msra.mxu0 %v562
    %627 = vmatprep.subr.mxu0 %v566
    %628 = vmatpush1.msra.mxu0 %v565
    %629 = vmatprep.subr.mxu0 %v569
    %630 = vmatpush1.msra.mxu0 %v568
    %631 = vmatprep.subr.mxu0 %v572
    %632 = vmatpush1.msra.mxu0 %v571
    %633 = vmatprep.subr.mxu0 %v575
    %634 = vmatpush1.msra.mxu0 %v574
    %635 = vmatprep.subr.mxu0 %v578
    %636 = vmatpush1.msra.mxu0 %v577
    %637 = vmatprep.subr.mxu0 %v581
    %638 = vmatpush1.msra.mxu0 %v580
    %639 = vmatprep.subr.mxu0 %v584
    %640 = vmatpush1.msra.mxu0 %v583
    %641 = vmatprep.subr.mxu0 %v587
    %642 = vmatpush1.msra.mxu0 %v586
    %643 = vmatprep.subr.mxu0 %v590
    %644 = vmatpush1.msra.mxu0 %v589
    %645 = vmatprep.subr.mxu0 %v593
    %646 = vmatpush1.msra.mxu0 %v592
    %647 = vmatprep.subr.mxu0 %v596
    %648 = vmatpush1.msra.mxu0 %v595
    %649 = vmatprep.subr.mxu0 %v599
    %650 = vmatpush1.msra.mxu0 %v598
    %651 = vmatprep.subr.mxu0 %v602
    %652 = vmatpush1.msra.mxu0 %v601
    %653 = vmatprep.subr.mxu0 0.0
    %654 = vmatpush1.msra.mxu0 0.0
    %655 = vmatprep.subr.mxu0 0.0
    %656 = vmatpush1.msra.mxu0 0.0
    %657 = vmatprep.subr.mxu0 0.0
    %658 = vmatpush1.msra.mxu0 0.0
    %659 = vmatprep.subr.mxu0 0.0
    %660 = vmatpush1.msra.mxu0 0.0
    %661 = vmatprep.subr.mxu0 0.0
    %662 = vmatpush1.msra.mxu0 0.0
    %663 = vmatprep.subr.mxu0 0.0
    %664 = vmatpush1.msra.mxu0 0.0
    %665 = vmatprep.subr.mxu0 0.0
    %666 = vmatpush1.msra.mxu0 0.0
    %667 = vmatprep.subr.mxu0 0.0
    %668 = vmatpush1.msra.mxu0 0.0
    %669 = vmatprep.subr.mxu0 0.0
    %670 = vmatpush1.msra.mxu0 0.0
    %671 = vmatprep.subr.mxu0 0.0
    %672 = vmatpush1.msra.mxu0 0.0
    %673 = vmatprep.subr.mxu0 0.0
    %674 = vmatpush1.msra.mxu0 0.0
    %675 = vmatprep.subr.mxu0 0.0
    %676 = vmatpush1.msra.mxu0 0.0
    %677 = vmatprep.subr.mxu0 0.0
    %678 = vmatpush1.msra.mxu0 0.0
    %679 = vmatprep.subr.mxu0 0.0
    %680 = vmatpush1.msra.mxu0 0.0
    %681 = vmatprep.subr.mxu0 0.0
    %682 = vmatpush1.msra.mxu0 0.0
    %683 = vmatprep.subr.mxu0 0.0
    %684 = vmatpush1.msra.mxu0 0.0
    %685 = vmatprep.mubr.f32.mxu0 0.0
    %686 = vmatmul.mubr.f32.gmra.mrb[0].mxu0 %v548
    %v687 = vpop.f32.mrb[0].mxu0
    %v688 = vadd.f32 %v609, %v687
    %v689 = vpop.f32.mrb[0].mxu0
    %v690 = vadd.f32 %v613, %v689
    %691 = vmatprep.mubr.f32.mxu0 0.0
    %692 = vmatmul.mubr.f32.gmra.mrb[0].mxu0 %v549
    %v693 = vpop.f32.mrb[0].mxu0
    %v694 = vadd.f32 %v609, %v693
    %v695 = vpop.f32.mrb[0].mxu0
    %v696 = vadd.f32 %v613, %v695
    %697 = vmatprep.mubr.f32.mxu0 0.0
    %698 = vmatmul.mubr.f32.gmra.mrb[0].mxu0 %v550
    %v699 = vpop.f32.mrb[0].mxu0
    %v700 = vadd.f32 %v609, %v699
    %v701 = vpop.f32.mrb[0].mxu0
    %v702 = vadd.f32 %v613, %v701
    %703 = vmatprep.mubr.f32.mxu0 0.0
    %704 = vmatmul.mubr.f32.gmra.mrb[0].mxu0 %v551
    %v705 = vpop.f32.mrb[0].mxu0
    %v706 = vadd.f32 %v609, %v705
    %v707 = vpop.f32.mrb[0].mxu0
    %v708 = vadd.f32 %v613, %v707
    %709 = vmatprep.mubr.f32.mxu0 0.0
    %710 = vmatmul.mubr.f32.gmra.mrb[0].mxu0 %v552
    %v711 = vpop.f32.mrb[0].mxu0
    %v712 = vadd.f32 %v609, %v711
    %v713 = vpop.f32.mrb[0].mxu0
    %v714 = vadd.f32 %v613, %v713
    %715 = vmatprep.mubr.f32.mxu0 0.0
    %716 = vmatmul.mubr.f32.gmra.mrb[0].mxu0 %v553
    %v717 = vpop.f32.mrb[0].mxu0
    %v718 = vadd.f32 %v609, %v717
    %v719 = vpop.f32.mrb[0].mxu0
    %v720 = vadd.f32 %v613, %v719
    %721 = vmatprep.mubr.f32.mxu0 0.0
    %722 = vmatmul.mubr.f32.gmra.mrb[0].mxu0 %v554
    %v723 = vpop.f32.mrb[0].mxu0
    %v724 = vadd.f32 %v609, %v723
    %v725 = vpop.f32.mrb[0].mxu0
    %v726 = vadd.f32 %v613, %v725
    %727 = vmatprep.mubr.f32.mxu0 0.0
    %728 = vmatmul.mubr.f32.gmra.mrb[0].mxu0 %v555
    %v729 = vpop.f32.mrb[0].mxu0
    %v730 = vadd.f32 %v609, %v729
    %v731 = vpop.f32.mrb[0].mxu0
    %v732 = vadd.f32 %v613, %v731
    %733 = vdwg.mxu0
    %734 = vmatprep.subr.mxu0 0.0
    %735 = vmatpush1.msra.mxu0 %v558
    %736 = vmatprep.subr.mxu0 0.0
    %737 = vmatpush1.msra.mxu0 %v561
    %738 = vmatprep.subr.mxu0 0.0
    %739 = vmatpush1.msra.mxu0 %v564
    %740 = vmatprep.subr.mxu0 0.0
    %741 = vmatpush1.msra.mxu0 %v567
    %742 = vmatprep.subr.mxu0 0.0
    %743 = vmatpush1.msra.mxu0 %v570
    %744 = vmatprep.subr.mxu0 0.0
    %745 = vmatpush1.msra.mxu0 %v573
    %746 = vmatprep.subr.mxu0 0.0
    %747 = vmatpush1.msra.mxu0 %v576
    %748 = vmatprep.subr.mxu0 0.0
    %749 = vmatpush1.msra.mxu0 %v579
    %750 = vmatprep.subr.mxu0 0.0
    %751 = vmatpush1.msra.mxu0 %v582
    %752 = vmatprep.subr.mxu0 0.0
    %753 = vmatpush1.msra.mxu0 %v585
    %754 = vmatprep.subr.mxu0 0.0
    %755 = vmatpush1.msra.mxu0 %v588
    %756 = vmatprep.subr.mxu0 0.0
    %757 = vmatpush1.msra.mxu0 %v591
    %758 = vmatprep.subr.mxu0 0.0
    %759 = vmatpush1.msra.mxu0 %v594
    %760 = vmatprep.subr.mxu0 0.0
    %761 = vmatpush1.msra.mxu0 %v597
    %762 = vmatprep.subr.mxu0 0.0
    %763 = vmatpush1.msra.mxu0 %v600
    %764 = vmatprep.subr.mxu0 0.0
    %765 = vmatpush1.msra.mxu0 %v603
    %766 = vmatprep.subr.mxu0 0.0
    %767 = vmatpush1.msra.mxu0 0.0
    %768 = vmatprep.subr.mxu0 0.0
    %769 = vmatpush1.msra.mxu0 0.0
    %770 = vmatprep.subr.mxu0 0.0
    %771 = vmatpush1.msra.mxu0 0.0
    %772 = vmatprep.subr.mxu0 0.0
    %773 = vmatpush1.msra.mxu0 0.0
    %774 = vmatprep.subr.mxu0 0.0
    %775 = vmatpush1.msra.mxu0 0.0
    %776 = vmatprep.subr.mxu0 0.0
    %777 = vmatpush1.msra.mxu0 0.0
    %778 = vmatprep.subr.mxu0 0.0
    %779 = vmatpush1.msra.mxu0 0.0
    %780 = vmatprep.subr.mxu0 0.0
    %781 = vmatpush1.msra.mxu0 0.0
    %782 = vmatprep.subr.mxu0 0.0
    %783 = vmatpush1.msra.mxu0 0.0
    %784 = vmatprep.subr.mxu0 0.0
    %785 = vmatpush1.msra.mxu0 0.0
    %786 = vmatprep.subr.mxu0 0.0
    %787 = vmatpush1.msra.mxu0 0.0
    %788 = vmatprep.subr.mxu0 0.0
    %789 = vmatpush1.msra.mxu0 0.0
    %790 = vmatprep.subr.mxu0 0.0
    %791 = vmatpush1.msra.mxu0 0.0
    %792 = vmatprep.subr.mxu0 0.0
    %793 = vmatpush1.msra.mxu0 0.0
    %794 = vmatprep.subr.mxu0 0.0
    %795 = vmatpush1.msra.mxu0 0.0
    %796 = vmatprep.subr.mxu0 0.0
    %797 = vmatpush1.msra.mxu0 0.0
    %798 = vmatprep.mubr.f32.mxu0 0.0
    %799 = vmatmul.mubr.f32.gmra.mrb[0].mxu0 %v548
    %v800 = vpop.f32.mrb[0].mxu0
    %v801 = vadd.f32 %v617, %v800
    %v802 = vpop.f32.mrb[0].mxu0
    %803 = vmatprep.mubr.f32.mxu0 0.0
    %804 = vmatmul.mubr.f32.gmra.mrb[0].mxu0 %v549
    %v805 = vpop.f32.mrb[0].mxu0
    %v806 = vadd.f32 %v617, %v805
    %v807 = vpop.f32.mrb[0].mxu0
    %808 = vmatprep.mubr.f32.mxu0 0.0
    %809 = vmatmul.mubr.f32.gmra.mrb[0].mxu0 %v550
    %v810 = vpop.f32.mrb[0].mxu0
    %v811 = vadd.f32 %v617, %v810
    %v812 = vpop.f32.mrb[0].mxu0
    %813 = vmatprep.mubr.f32.mxu0 0.0
    %814 = vmatmul.mubr.f32.gmra.mrb[0].mxu0 %v551
    %v815 = vpop.f32.mrb[0].mxu0
    %v816 = vadd.f32 %v617, %v815
    %v817 = vpop.f32.mrb[0].mxu0
    %818 = vmatprep.mubr.f32.mxu0 0.0
    %819 = vmatmul.mubr.f32.gmra.mrb[0].mxu0 %v552
    %v820 = vpop.f32.mrb[0].mxu0
    %v821 = vadd.f32 %v617, %v820
    %v822 = vpop.f32.mrb[0].mxu0
    %823 = vmatprep.mubr.f32.mxu0 0.0
    %824 = vmatmul.mubr.f32.gmra.mrb[0].mxu0 %v553
    %v825 = vpop.f32.mrb[0].mxu0
    %v826 = vadd.f32 %v617, %v825
    %v827 = vpop.f32.mrb[0].mxu0
    %828 = vmatprep.mubr.f32.mxu0 0.0
    %829 = vmatmul.mubr.f32.gmra.mrb[0].mxu0 %v554
    %v830 = vpop.f32.mrb[0].mxu0
    %v831 = vadd.f32 %v617, %v830
    %v832 = vpop.f32.mrb[0].mxu0
    %833 = vmatprep.mubr.f32.mxu0 0.0
    %834 = vmatmul.mubr.f32.gmra.mrb[0].mxu0 %v555
    %v835 = vpop.f32.mrb[0].mxu0
    %v836 = vadd.f32 %v617, %v835
    %v837 = vpop.f32.mrb[0].mxu0
    %838 = vdwg.mxu0
    %v839 = vld [vmem:[#allocation7] sm:$0xff]
    %v840 = vld [vmem:[#allocation7 + $0x8] sm:$0xff]
    %v841 = vld [vmem:[#allocation7 + $0x10] sm:$0xff]
    %v842 = vld [vmem:[#allocation7 + $0x18] sm:$0xff]
    %v843 = vld [vmem:[#allocation7 + $0x20] sm:$0xff]
    %v844 = vld [vmem:[#allocation7 + $0x28] sm:$0xff]
    %v845 = vld [vmem:[#allocation7 + $0x30] sm:$0xff]
    %v846 = vld [vmem:[#allocation7 + $0x38] sm:$0xff]
    %v847 = vld [vmem:[#allocation7 + $0x40] sm:$0xff]
    %v848 = vld [vmem:[#allocation7 + $0x48] sm:$0xff]
    %v849 = vld [vmem:[#allocation7 + $0x50] sm:$0xff]
    %v850 = vld [vmem:[#allocation7 + $0x58] sm:$0xff]
    %v851 = vld [vmem:[#allocation7 + $0x60] sm:$0xff]
    %v852 = vld [vmem:[#allocation7 + $0x68] sm:$0xff]
    %v853 = vld [vmem:[#allocation7 + $0x70] sm:$0xff]
    %v854 = vld [vmem:[#allocation7 + $0x78] sm:$0xff]
    %v855 = vld [vmem:[#allocation7 + $0x80] sm:$0xff]
    %v856 = vld [vmem:[#allocation7 + $0x88] sm:$0xff]
    %v857 = vld [vmem:[#allocation7 + $0x90] sm:$0xff]
    %v858 = vld [vmem:[#allocation7 + $0x98] sm:$0xff]
    %v859 = vld [vmem:[#allocation7 + $0xa0] sm:$0xff]
    %v860 = vld [vmem:[#allocation7 + $0xa8] sm:$0xff]
    %v861 = vld [vmem:[#allocation7 + $0xb0] sm:$0xff]
    %v862 = vld [vmem:[#allocation7 + $0xb8] sm:$0xff]
    %v863 = vld [vmem:[#allocation7 + $0xc0] sm:$0xff]
    %v864 = vld [vmem:[#allocation7 + $0xc8] sm:$0xff]
    %v865 = vld [vmem:[#allocation7 + $0xd0] sm:$0xff]
    %v866 = vld [vmem:[#allocation7 + $0xd8] sm:$0xff]
    %v867 = vld [vmem:[#allocation7 + $0xe0] sm:$0xff]
    %v868 = vld [vmem:[#allocation7 + $0xe8] sm:$0xff]
    %v869 = vld [vmem:[#allocation7 + $0xf0] sm:$0xff]
    %v870 = vld [vmem:[#allocation7 + $0xf8] sm:$0xff]
    %v871 = vld [vmem:[#allocation7 + $0x100] sm:$0xff]
    %v872 = vld [vmem:[#allocation7 + $0x108] sm:$0xff]
    %v873 = vld [vmem:[#allocation7 + $0x110] sm:$0xff]
    %v874 = vld [vmem:[#allocation7 + $0x118] sm:$0xff]
    %v875 = vld [vmem:[#allocation7 + $0x120] sm:$0xff]
    %v876 = vld [vmem:[#allocation7 + $0x128] sm:$0xff]
    %v877 = vld [vmem:[#allocation7 + $0x130] sm:$0xff]
    %v878 = vld [vmem:[#allocation7 + $0x138] sm:$0xff]
    %v879 = vld [vmem:[#allocation7 + $0x140] sm:$0xff]
    %v880 = vld [vmem:[#allocation7 + $0x148] sm:$0xff]
    %v881 = vld [vmem:[#allocation7 + $0x150] sm:$0xff]
    %v882 = vld [vmem:[#allocation7 + $0x158] sm:$0xff]
    %v883 = vld [vmem:[#allocation7 + $0x160] sm:$0xff]
    %v884 = vld [vmem:[#allocation7 + $0x168] sm:$0xff]
    %v885 = vld [vmem:[#allocation7 + $0x170] sm:$0xff]
    %v886 = vld [vmem:[#allocation7 + $0x178] sm:$0xff]
    %v887 = vld [vmem:[%s10] sm:$0x7]
    %v888 = vld [vmem:[%s11] sm:$0xff]
    %v890 = vlaneseq
    %v891 = vshrl.u32 %v890, 7
    %v892 = vsub.s32 0, %v891
    %v893 = vrot.slane %v887, %v892
    %v894 = vlaneseq
    %v895 = vshrl.u32 %v894, 7
    %v896 = vsub.s32 1, %v895
    %v897 = vrot.slane %v887, %v896
    %v898 = vlaneseq
    %v899 = vshrl.u32 %v898, 7
    %v900 = vsub.s32 2, %v899
    %v901 = vrot.slane %v887, %v900
    %905 = vmatprep.subr.mxu0 %v840
    %906 = vmatpush1.msra.mxu0 %v839
    %907 = vmatprep.subr.mxu0 %v843
    %908 = vmatpush1.msra.mxu0 %v842
    %909 = vmatprep.subr.mxu0 %v846
    %910 = vmatpush1.msra.mxu0 %v845
    %911 = vmatprep.subr.mxu0 %v849
    %912 = vmatpush1.msra.mxu0 %v848
    %913 = vmatprep.subr.mxu0 %v852
    %914 = vmatpush1.msra.mxu0 %v851
    %915 = vmatprep.subr.mxu0 %v855
    %916 = vmatpush1.msra.mxu0 %v854
    %917 = vmatprep.subr.mxu0 %v858
    %918 = vmatpush1.msra.mxu0 %v857
    %919 = vmatprep.subr.mxu0 %v861
    %920 = vmatpush1.msra.mxu0 %v860
    %921 = vmatprep.subr.mxu0 %v864
    %922 = vmatpush1.msra.mxu0 %v863
    %923 = vmatprep.subr.mxu0 %v867
    %924 = vmatpush1.msra.mxu0 %v866
    %925 = vmatprep.subr.mxu0 %v870
    %926 = vmatpush1.msra.mxu0 %v869
    %927 = vmatprep.subr.mxu0 %v873
    %928 = vmatpush1.msra.mxu0 %v872
    %929 = vmatprep.subr.mxu0 %v876
    %930 = vmatpush1.msra.mxu0 %v875
    %931 = vmatprep.subr.mxu0 %v879
    %932 = vmatpush1.msra.mxu0 %v878
    %933 = vmatprep.subr.mxu0 %v882
    %934 = vmatpush1.msra.mxu0 %v881
    %935 = vmatprep.subr.mxu0 %v885
    %936 = vmatpush1.msra.mxu0 %v884
    %937 = vmatprep.subr.mxu0 0.0
    %938 = vmatpush1.msra.mxu0 0.0
    %939 = vmatprep.subr.mxu0 0.0
    %940 = vmatpush1.msra.mxu0 0.0
    %941 = vmatprep.subr.mxu0 0.0
    %942 = vmatpush1.msra.mxu0 0.0
    %943 = vmatprep.subr.mxu0 0.0
    %944 = vmatpush1.msra.mxu0 0.0
    %945 = vmatprep.subr.mxu0 0.0
    %946 = vmatpush1.msra.mxu0 0.0
    %947 = vmatprep.subr.mxu0 0.0
    %948 = vmatpush1.msra.mxu0 0.0
    %949 = vmatprep.subr.mxu0 0.0
    %950 = vmatpush1.msra.mxu0 0.0
    %951 = vmatprep.subr.mxu0 0.0
    %952 = vmatpush1.msra.mxu0 0.0
    %953 = vmatprep.subr.mxu0 0.0
    %954 = vmatpush1.msra.mxu0 0.0
    %955 = vmatprep.subr.mxu0 0.0
    %956 = vmatpush1.msra.mxu0 0.0
    %957 = vmatprep.subr.mxu0 0.0
    %958 = vmatpush1.msra.mxu0 0.0
    %959 = vmatprep.subr.mxu0 0.0
    %960 = vmatpush1.msra.mxu0 0.0
    %961 = vmatprep.subr.mxu0 0.0
    %962 = vmatpush1.msra.mxu0 0.0
    %963 = vmatprep.subr.mxu0 0.0
    %964 = vmatpush1.msra.mxu0 0.0
    %965 = vmatprep.subr.mxu0 0.0
    %966 = vmatpush1.msra.mxu0 0.0
    %967 = vmatprep.subr.mxu0 0.0
    %968 = vmatpush1.msra.mxu0 0.0
    %969 = vmatprep.mubr.f32.mxu0 0.0
    %970 = vmatmul.mubr.f32.gmra.mrb[0].mxu0 %v888
    %v971 = vpop.f32.mrb[0].mxu0
    %v972 = vadd.f32 %v893, %v971
    %v973 = vpop.f32.mrb[0].mxu0
    %v974 = vadd.f32 %v897, %v973
    %975 = vdwg.mxu0
    %976 = vmatprep.subr.mxu0 0.0
    %977 = vmatpush1.msra.mxu0 %v841
    %978 = vmatprep.subr.mxu0 0.0
    %979 = vmatpush1.msra.mxu0 %v844
    %980 = vmatprep.subr.mxu0 0.0
    %981 = vmatpush1.msra.mxu0 %v847
    %982 = vmatprep.subr.mxu0 0.0
    %983 = vmatpush1.msra.mxu0 %v850
    %984 = vmatprep.subr.mxu0 0.0
    %985 = vmatpush1.msra.mxu0 %v853
    %986 = vmatprep.subr.mxu0 0.0
    %987 = vmatpush1.msra.mxu0 %v856
    %988 = vmatprep.subr.mxu0 0.0
    %989 = vmatpush1.msra.mxu0 %v859
    %990 = vmatprep.subr.mxu0 0.0
    %991 = vmatpush1.msra.mxu0 %v862
    %992 = vmatprep.subr.mxu0 0.0
    %993 = vmatpush1.msra.mxu0 %v865
    %994 = vmatprep.subr.mxu0 0.0
    %995 = vmatpush1.msra.mxu0 %v868
    %996 = vmatprep.subr.mxu0 0.0
    %997 = vmatpush1.msra.mxu0 %v871
    %998 = vmatprep.subr.mxu0 0.0
    %999 = vmatpush1.msra.mxu0 %v874
    %1000 = vmatprep.subr.mxu0 0.0
    %1001 = vmatpush1.msra.mxu0 %v877
    %1002 = vmatprep.subr.mxu0 0.0
    %1003 = vmatpush1.msra.mxu0 %v880
    %1004 = vmatprep.subr.mxu0 0.0
    %1005 = vmatpush1.msra.mxu0 %v883
    %1006 = vmatprep.subr.mxu0 0.0
    %1007 = vmatpush1.msra.mxu0 %v886
    %1008 = vmatprep.subr.mxu0 0.0
    %1009 = vmatpush1.msra.mxu0 0.0
    %1010 = vmatprep.subr.mxu0 0.0
    %1011 = vmatpush1.msra.mxu0 0.0
    %1012 = vmatprep.subr.mxu0 0.0
    %1013 = vmatpush1.msra.mxu0 0.0
    %1014 = vmatprep.subr.mxu0 0.0
    %1015 = vmatpush1.msra.mxu0 0.0
    %1016 = vmatprep.subr.mxu0 0.0
    %1017 = vmatpush1.msra.mxu0 0.0
    %1018 = vmatprep.subr.mxu0 0.0
    %1019 = vmatpush1.msra.mxu0 0.0
    %1020 = vmatprep.subr.mxu0 0.0
    %1021 = vmatpush1.msra.mxu0 0.0
    %1022 = vmatprep.subr.mxu0 0.0
    %1023 = vmatpush1.msra.mxu0 0.0
    %1024 = vmatprep.subr.mxu0 0.0
    %1025 = vmatpush1.msra.mxu0 0.0
    %1026 = vmatprep.subr.mxu0 0.0
    %1027 = vmatpush1.msra.mxu0 0.0
    %1028 = vmatprep.subr.mxu0 0.0
    %1029 = vmatpush1.msra.mxu0 0.0
    %1030 = vmatprep.subr.mxu0 0.0
    %1031 = vmatpush1.msra.mxu0 0.0
    %1032 = vmatprep.subr.mxu0 0.0
    %1033 = vmatpush1.msra.mxu0 0.0
    %1034 = vmatprep.subr.mxu0 0.0
    %1035 = vmatpush1.msra.mxu0 0.0
    %1036 = vmatprep.subr.mxu0 0.0
    %1037 = vmatpush1.msra.mxu0 0.0
    %1038 = vmatprep.subr.mxu0 0.0
    %1039 = vmatpush1.msra.mxu0 0.0
    %1040 = vmatprep.mubr.f32.mxu0 0.0
    %1041 = vmatmul.mubr.f32.gmra.mrb[0].mxu0 %v888
    %v1042 = vpop.f32.mrb[0].mxu0
    %v1043 = vadd.f32 %v901, %v1042
    %v1044 = vpop.f32.mrb[0].mxu0
    %1045 = vdwg.mxu0
    %v1046 = vadd.f32 %v688, %v972
    %v1047 = vxor.u32 %v1046, 2147483648
    %v1048 = vmul.f32 %v1047, 1.442695
    %v1049 = vpow.pop %v1048
    %v1050 = vadd.f32 %v1049, 1.0
    %v1051 = vrcp.pop %v1050
    %v1052 = vmul.f32 1.0, %v1051
    %v1053 = vadd.f32 %v690, %v974
    %v1054 = vxor.u32 %v1053, 2147483648
    %v1055 = vmul.f32 %v1054, 1.442695
    %v1056 = vpow.pop %v1055
    %v1057 = vadd.f32 %v1056, 1.0
    %v1058 = vrcp.pop %v1057
    %v1059 = vmul.f32 1.0, %v1058
    %v1060 = vmul.f32 %v1052, %v1043
    %v1061 = vadd.f32 %v801, %v1060
    %v1062 = vtanh.pop %v1061
    %v1063 = vsub.f32 1.0, %v1059
    %v1064 = vmul.f32 %v1063, %v1062
    %v1065 = vmul.f32 %v1059, %v888
    %v1066 = vadd.f32 %v1064, %v1065
    %1067 = vmatprep.subr.mxu0 %v840
    %1068 = vmatpush1.msra.mxu0 %v839
    %1069 = vmatprep.subr.mxu0 %v843
    %1070 = vmatpush1.msra.mxu0 %v842
    %1071 = vmatprep.subr.mxu0 %v846
    %1072 = vmatpush1.msra.mxu0 %v845
    %1073 = vmatprep.subr.mxu0 %v849
    %1074 = vmatpush1.msra.mxu0 %v848
    %1075 = vmatprep.subr.mxu0 %v852
    %1076 = vmatpush1.msra.mxu0 %v851
    %1077 = vmatprep.subr.mxu0 %v855
    %1078 = vmatpush1.msra.mxu0 %v854
    %1079 = vmatprep.subr.mxu0 %v858
    %1080 = vmatpush1.msra.mxu0 %v857
    %1081 = vmatprep.subr.mxu0 %v861
    %1082 = vmatpush1.msra.mxu0 %v860
    %1083 = vmatprep.subr.mxu0 %v864
    %1084 = vmatpush1.msra.mxu0 %v863
    %1085 = vmatprep.subr.mxu0 %v867
    %1086 = vmatpush1.msra.mxu0 %v866
    %1087 = vmatprep.subr.mxu0 %v870
    %1088 = vmatpush1.msra.mxu0 %v869
    %1089 = vmatprep.subr.mxu0 %v873
    %1090 = vmatpush1.msra.mxu0 %v872
    %1091 = vmatprep.subr.mxu0 %v876
    %1092 = vmatpush1.msra.mxu0 %v875
    %1093 = vmatprep.subr.mxu0 %v879
    %1094 = vmatpush1.msra.mxu0 %v878
    %1095 = vmatprep.subr.mxu0 %v882
    %1096 = vmatpush1.msra.mxu0 %v881
    %1097 = vmatprep.subr.mxu0 %v885
    %1098 = vmatpush1.msra.mxu0 %v884
    %1099 = vmatprep.subr.mxu0 0.0
    %1100 = vmatpush1.msra.mxu0 0.0
    %1101 = vmatprep.subr.mxu0 0.0
    %1102 = vmatpush1.msra.mxu0 0.0
    %1103 = vmatprep.subr.mxu0 0.0
    %1104 = vmatpush1.msra.mxu0 0.0
    %1105 = vmatprep.subr.mxu0 0.0
    %1106 = vmatpush1.msra.mxu0 0.0
    %1107 = vmatprep.subr.mxu0 0.0
    %1108 = vmatpush1.msra.mxu0 0.0
    %1109 = vmatprep.subr.mxu0 0.0
    %1110 = vmatpush1.msra.mxu0 0.0
    %1111 = vmatprep.subr.mxu0 0.0
    %1112 = vmatpush1.msra.mxu0 0.0
    %1113 = vmatprep.subr.mxu0 0.0
    %1114 = vmatpush1.msra.mxu0 0.0
    %1115 = vmatprep.subr.mxu0 0.0
    %1116 = vmatpush1.msra.mxu0 0.0
    %1117 = vmatprep.subr.mxu0 0.0
    %1118 = vmatpush1.msra.mxu0 0.0
    %1119 = vmatprep.subr.mxu0 0.0
    %1120 = vmatpush1.msra.mxu0 0.0
    %1121 = vmatprep.subr.mxu0 0.0
    %1122 = vmatpush1.msra.mxu0 0.0
    %1123 = vmatprep.subr.mxu0 0.0
    %1124 = vmatpush1.msra.mxu0 0.0
    %1125 = vmatprep.subr.mxu0 0.0
    %1126 = vmatpush1.msra.mxu0 0.0
    %1127 = vmatprep.subr.mxu0 0.0
    %1128 = vmatpush1.msra.mxu0 0.0
    %1129 = vmatprep.subr.mxu0 0.0
    %1130 = vmatpush1.msra.mxu0 0.0
    %1131 = vmatprep.mubr.f32.mxu0 0.0
    %1132 = vmatmul.mubr.f32.gmra.mrb[0].mxu0 %v1066
    %v1133 = vpop.f32.mrb[0].mxu0
    %v1134 = vadd.f32 %v893, %v1133
    %v1135 = vpop.f32.mrb[0].mxu0
    %v1136 = vadd.f32 %v897, %v1135
    %1137 = vdwg.mxu0
    %1138 = vmatprep.subr.mxu0 0.0
    %1139 = vmatpush1.msra.mxu0 %v841
    %1140 = vmatprep.subr.mxu0 0.0
    %1141 = vmatpush1.msra.mxu0 %v844
    %1142 = vmatprep.subr.mxu0 0.0
    %1143 = vmatpush1.msra.mxu0 %v847
    %1144 = vmatprep.subr.mxu0 0.0
    %1145 = vmatpush1.msra.mxu0 %v850
    %1146 = vmatprep.subr.mxu0 0.0
    %1147 = vmatpush1.msra.mxu0 %v853
    %1148 = vmatprep.subr.mxu0 0.0
    %1149 = vmatpush1.msra.mxu0 %v856
    %1150 = vmatprep.subr.mxu0 0.0
    %1151 = vmatpush1.msra.mxu0 %v859
    %1152 = vmatprep.subr.mxu0 0.0
    %1153 = vmatpush1.msra.mxu0 %v862
    %1154 = vmatprep.subr.mxu0 0.0
    %1155 = vmatpush1.msra.mxu0 %v865
    %1156 = vmatprep.subr.mxu0 0.0
    %1157 = vmatpush1.msra.mxu0 %v868
    %1158 = vmatprep.subr.mxu0 0.0
    %1159 = vmatpush1.msra.mxu0 %v871
    %1160 = vmatprep.subr.mxu0 0.0
    %1161 = vmatpush1.msra.mxu0 %v874
    %1162 = vmatprep.subr.mxu0 0.0
    %1163 = vmatpush1.msra.mxu0 %v877
    %1164 = vmatprep.subr.mxu0 0.0
    %1165 = vmatpush1.msra.mxu0 %v880
    %1166 = vmatprep.subr.mxu0 0.0
    %1167 = vmatpush1.msra.mxu0 %v883
    %1168 = vmatprep.subr.mxu0 0.0
    %1169 = vmatpush1.msra.mxu0 %v886
    %1170 = vmatprep.subr.mxu0 0.0
    %1171 = vmatpush1.msra.mxu0 0.0
    %1172 = vmatprep.subr.mxu0 0.0
    %1173 = vmatpush1.msra.mxu0 0.0
    %1174 = vmatprep.subr.mxu0 0.0
    %1175 = vmatpush1.msra.mxu0 0.0
    %1176 = vmatprep.subr.mxu0 0.0
    %1177 = vmatpush1.msra.mxu0 0.0
    %1178 = vmatprep.subr.mxu0 0.0
    %1179 = vmatpush1.msra.mxu0 0.0
    %1180 = vmatprep.subr.mxu0 0.0
    %1181 = vmatpush1.msra.mxu0 0.0
    %1182 = vmatprep.subr.mxu0 0.0
    %1183 = vmatpush1.msra.mxu0 0.0
    %1184 = vmatprep.subr.mxu0 0.0
    %1185 = vmatpush1.msra.mxu0 0.0
    %1186 = vmatprep.subr.mxu0 0.0
    %1187 = vmatpush1.msra.mxu0 0.0
    %1188 = vmatprep.subr.mxu0 0.0
    %1189 = vmatpush1.msra.mxu0 0.0
    %1190 = vmatprep.subr.mxu0 0.0
    %1191 = vmatpush1.msra.mxu0 0.0
    %1192 = vmatprep.subr.mxu0 0.0
    %1193 = vmatpush1.msra.mxu0 0.0
    %1194 = vmatprep.subr.mxu0 0.0
    %1195 = vmatpush1.msra.mxu0 0.0
    %1196 = vmatprep.subr.mxu0 0.0
    %1197 = vmatpush1.msra.mxu0 0.0
    %1198 = vmatprep.subr.mxu0 0.0
    %1199 = vmatpush1.msra.mxu0 0.0
    %1200 = vmatprep.subr.mxu0 0.0
    %1201 = vmatpush1.msra.mxu0 0.0
    %1202 = vmatprep.mubr.f32.mxu0 0.0
    %1203 = vmatmul.mubr.f32.gmra.mrb[0].mxu0 %v1066
    %v1204 = vpop.f32.mrb[0].mxu0
    %v1205 = vadd.f32 %v901, %v1204
    %v1206 = vpop.f32.mrb[0].mxu0
    %1207 = vdwg.mxu0
    %v1208 = vadd.f32 %v694, %v1134
    %v1209 = vxor.u32 %v1208, 2147483648
    %v1210 = vmul.f32 %v1209, 1.442695
    %v1211 = vpow.pop %v1210
    %v1212 = vadd.f32 %v1211, 1.0
    %v1213 = vrcp.pop %v1212
    %v1214 = vmul.f32 1.0, %v1213
    %v1215 = vadd.f32 %v696, %v1136
    %v1216 = vxor.u32 %v1215, 2147483648
    %v1217 = vmul.f32 %v1216, 1.442695
    %v1218 = vpow.pop %v1217
    %v1219 = vadd.f32 %v1218, 1.0
    %v1220 = vrcp.pop %v1219
    %v1221 = vmul.f32 1.0, %v1220
    %v1222 = vmul.f32 %v1214, %v1205
    %v1223 = vadd.f32 %v806, %v1222
    %v1224 = vtanh.pop %v1223
    %v1225 = vsub.f32 1.0, %v1221
    %v1226 = vmul.f32 %v1225, %v1224
    %v1227 = vmul.f32 %v1221, %v1066
    %v1228 = vadd.f32 %v1226, %v1227
    %1229 = vmatprep.subr.mxu0 %v840
    %1230 = vmatpush1.msra.mxu0 %v839
    %1231 = vmatprep.subr.mxu0 %v843
    %1232 = vmatpush1.msra.mxu0 %v842
    %1233 = vmatprep.subr.mxu0 %v846
    %1234 = vmatpush1.msra.mxu0 %v845
    %1235 = vmatprep.subr.mxu0 %v849
    %1236 = vmatpush1.msra.mxu0 %v848
    %1237 = vmatprep.subr.mxu0 %v852
    %1238 = vmatpush1.msra.mxu0 %v851
    %1239 = vmatprep.subr.mxu0 %v855
    %1240 = vmatpush1.msra.mxu0 %v854
    %1241 = vmatprep.subr.mxu0 %v858
    %1242 = vmatpush1.msra.mxu0 %v857
    %1243 = vmatprep.subr.mxu0 %v861
    %1244 = vmatpush1.msra.mxu0 %v860
    %1245 = vmatprep.subr.mxu0 %v864
    %1246 = vmatpush1.msra.mxu0 %v863
    %1247 = vmatprep.subr.mxu0 %v867
    %1248 = vmatpush1.msra.mxu0 %v866
    %1249 = vmatprep.subr.mxu0 %v870
    %1250 = vmatpush1.msra.mxu0 %v869
    %1251 = vmatprep.subr.mxu0 %v873
    %1252 = vmatpush1.msra.mxu0 %v872
    %1253 = vmatprep.subr.mxu0 %v876
    %1254 = vmatpush1.msra.mxu0 %v875
    %1255 = vmatprep.subr.mxu0 %v879
    %1256 = vmatpush1.msra.mxu0 %v878
    %1257 = vmatprep.subr.mxu0 %v882
    %1258 = vmatpush1.msra.mxu0 %v881
    %1259 = vmatprep.subr.mxu0 %v885
    %1260 = vmatpush1.msra.mxu0 %v884
    %1261 = vmatprep.subr.mxu0 0.0
    %1262 = vmatpush1.msra.mxu0 0.0
    %1263 = vmatprep.subr.mxu0 0.0
    %1264 = vmatpush1.msra.mxu0 0.0
    %1265 = vmatprep.subr.mxu0 0.0
    %1266 = vmatpush1.msra.mxu0 0.0
    %1267 = vmatprep.subr.mxu0 0.0
    %1268 = vmatpush1.msra.mxu0 0.0
    %1269 = vmatprep.subr.mxu0 0.0
    %1270 = vmatpush1.msra.mxu0 0.0
    %1271 = vmatprep.subr.mxu0 0.0
    %1272 = vmatpush1.msra.mxu0 0.0
    %1273 = vmatprep.subr.mxu0 0.0
    %1274 = vmatpush1.msra.mxu0 0.0
    %1275 = vmatprep.subr.mxu0 0.0
    %1276 = vmatpush1.msra.mxu0 0.0
    %1277 = vmatprep.subr.mxu0 0.0
    %1278 = vmatpush1.msra.mxu0 0.0
    %1279 = vmatprep.subr.mxu0 0.0
    %1280 = vmatpush1.msra.mxu0 0.0
    %1281 = vmatprep.subr.mxu0 0.0
    %1282 = vmatpush1.msra.mxu0 0.0
    %1283 = vmatprep.subr.mxu0 0.0
    %1284 = vmatpush1.msra.mxu0 0.0
    %1285 = vmatprep.subr.mxu0 0.0
    %1286 = vmatpush1.msra.mxu0 0.0
    %1287 = vmatprep.subr.mxu0 0.0
    %1288 = vmatpush1.msra.mxu0 0.0
    %1289 = vmatprep.subr.mxu0 0.0
    %1290 = vmatpush1.msra.mxu0 0.0
    %1291 = vmatprep.subr.mxu0 0.0
    %1292 = vmatpush1.msra.mxu0 0.0
    %1293 = vmatprep.mubr.f32.mxu0 0.0
    %1294 = vmatmul.mubr.f32.gmra.mrb[0].mxu0 %v1228
    %v1295 = vpop.f32.mrb[0].mxu0
    %v1296 = vadd.f32 %v893, %v1295
    %v1297 = vpop.f32.mrb[0].mxu0
    %v1298 = vadd.f32 %v897, %v1297
    %1299 = vdwg.mxu0
    %1300 = vmatprep.subr.mxu0 0.0
    %1301 = vmatpush1.msra.mxu0 %v841
    %1302 = vmatprep.subr.mxu0 0.0
    %1303 = vmatpush1.msra.mxu0 %v844
    %1304 = vmatprep.subr.mxu0 0.0
    %1305 = vmatpush1.msra.mxu0 %v847
    %1306 = vmatprep.subr.mxu0 0.0
    %1307 = vmatpush1.msra.mxu0 %v850
    %1308 = vmatprep.subr.mxu0 0.0
    %1309 = vmatpush1.msra.mxu0 %v853
    %1310 = vmatprep.subr.mxu0 0.0
    %1311 = vmatpush1.msra.mxu0 %v856
    %1312 = vmatprep.subr.mxu0 0.0
    %1313 = vmatpush1.msra.mxu0 %v859
    %1314 = vmatprep.subr.mxu0 0.0
    %1315 = vmatpush1.msra.mxu0 %v862
    %1316 = vmatprep.subr.mxu0 0.0
    %1317 = vmatpush1.msra.mxu0 %v865
    %1318 = vmatprep.subr.mxu0 0.0
    %1319 = vmatpush1.msra.mxu0 %v868
    %1320 = vmatprep.subr.mxu0 0.0
    %1321 = vmatpush1.msra.mxu0 %v871
    %1322 = vmatprep.subr.mxu0 0.0
    %1323 = vmatpush1.msra.mxu0 %v874
    %1324 = vmatprep.subr.mxu0 0.0
    %1325 = vmatpush1.msra.mxu0 %v877
    %1326 = vmatprep.subr.mxu0 0.0
    %1327 = vmatpush1.msra.mxu0 %v880
    %1328 = vmatprep.subr.mxu0 0.0
    %1329 = vmatpush1.msra.mxu0 %v883
    %1330 = vmatprep.subr.mxu0 0.0
    %1331 = vmatpush1.msra.mxu0 %v886
    %1332 = vmatprep.subr.mxu0 0.0
    %1333 = vmatpush1.msra.mxu0 0.0
    %1334 = vmatprep.subr.mxu0 0.0
    %1335 = vmatpush1.msra.mxu0 0.0
    %1336 = vmatprep.subr.mxu0 0.0
    %1337 = vmatpush1.msra.mxu0 0.0
    %1338 = vmatprep.subr.mxu0 0.0
    %1339 = vmatpush1.msra.mxu0 0.0
    %1340 = vmatprep.subr.mxu0 0.0
    %1341 = vmatpush1.msra.mxu0 0.0
    %1342 = vmatprep.subr.mxu0 0.0
    %1343 = vmatpush1.msra.mxu0 0.0
    %1344 = vmatprep.subr.mxu0 0.0
    %1345 = vmatpush1.msra.mxu0 0.0
    %1346 = vmatprep.subr.mxu0 0.0
    %1347 = vmatpush1.msra.mxu0 0.0
    %1348 = vmatprep.subr.mxu0 0.0
    %1349 = vmatpush1.msra.mxu0 0.0
    %1350 = vmatprep.subr.mxu0 0.0
    %1351 = vmatpush1.msra.mxu0 0.0
    %1352 = vmatprep.subr.mxu0 0.0
    %1353 = vmatpush1.msra.mxu0 0.0
    %1354 = vmatprep.subr.mxu0 0.0
    %1355 = vmatpush1.msra.mxu0 0.0
    %1356 = vmatprep.subr.mxu0 0.0
    %1357 = vmatpush1.msra.mxu0 0.0
    %1358 = vmatprep.subr.mxu0 0.0
    %1359 = vmatpush1.msra.mxu0 0.0
    %1360 = vmatprep.subr.mxu0 0.0
    %1361 = vmatpush1.msra.mxu0 0.0
    %1362 = vmatprep.subr.mxu0 0.0
    %1363 = vmatpush1.msra.mxu0 0.0
    %1364 = vmatprep.mubr.f32.mxu0 0.0
    %1365 = vmatmul.mubr.f32.gmra.mrb[0].mxu0 %v1228
    %v1366 = vpop.f32.mrb[0].mxu0
    %v1367 = vadd.f32 %v901, %v1366
    %v1368 = vpop.f32.mrb[0].mxu0
    %1369 = vdwg.mxu0
    %v1370 = vadd.f32 %v700, %v1296
    %v1371 = vxor.u32 %v1370, 2147483648
    %v1372 = vmul.f32 %v1371, 1.442695
    %v1373 = vpow.pop %v1372
    %v1374 = vadd.f32 %v1373, 1.0
    %v1375 = vrcp.pop %v1374
    %v1376 = vmul.f32 1.0, %v1375
    %v1377 = vadd.f32 %v702, %v1298
    %v1378 = vxor.u32 %v1377, 2147483648
    %v1379 = vmul.f32 %v1378, 1.442695
    %v1380 = vpow.pop %v1379
    %v1381 = vadd.f32 %v1380, 1.0
    %v1382 = vrcp.pop %v1381
    %v1383 = vmul.f32 1.0, %v1382
    %v1384 = vmul.f32 %v1376, %v1367
    %v1385 = vadd.f32 %v811, %v1384
    %v1386 = vtanh.pop %v1385
    %v1387 = vsub.f32 1.0, %v1383
    %v1388 = vmul.f32 %v1387, %v1386
    %v1389 = vmul.f32 %v1383, %v1228
    %v1390 = vadd.f32 %v1388, %v1389
    %1391 = vmatprep.subr.mxu0 %v840
    %1392 = vmatpush1.msra.mxu0 %v839
    %1393 = vmatprep.subr.mxu0 %v843
    %1394 = vmatpush1.msra.mxu0 %v842
    %1395 = vmatprep.subr.mxu0 %v846
    %1396 = vmatpush1.msra.mxu0 %v845
    %1397 = vmatprep.subr.mxu0 %v849
    %1398 = vmatpush1.msra.mxu0 %v848
    %1399 = vmatprep.subr.mxu0 %v852
    %1400 = vmatpush1.msra.mxu0 %v851
    %1401 = vmatprep.subr.mxu0 %v855
    %1402 = vmatpush1.msra.mxu0 %v854
    %1403 = vmatprep.subr.mxu0 %v858
    %1404 = vmatpush1.msra.mxu0 %v857
    %1405 = vmatprep.subr.mxu0 %v861
    %1406 = vmatpush1.msra.mxu0 %v860
    %1407 = vmatprep.subr.mxu0 %v864
    %1408 = vmatpush1.msra.mxu0 %v863
    %1409 = vmatprep.subr.mxu0 %v867
    %1410 = vmatpush1.msra.mxu0 %v866
    %1411 = vmatprep.subr.mxu0 %v870
    %1412 = vmatpush1.msra.mxu0 %v869
    %1413 = vmatprep.subr.mxu0 %v873
    %1414 = vmatpush1.msra.mxu0 %v872
    %1415 = vmatprep.subr.mxu0 %v876
    %1416 = vmatpush1.msra.mxu0 %v875
    %1417 = vmatprep.subr.mxu0 %v879
    %1418 = vmatpush1.msra.mxu0 %v878
    %1419 = vmatprep.subr.mxu0 %v882
    %1420 = vmatpush1.msra.mxu0 %v881
    %1421 = vmatprep.subr.mxu0 %v885
    %1422 = vmatpush1.msra.mxu0 %v884
    %1423 = vmatprep.subr.mxu0 0.0
    %1424 = vmatpush1.msra.mxu0 0.0
    %1425 = vmatprep.subr.mxu0 0.0
    %1426 = vmatpush1.msra.mxu0 0.0
    %1427 = vmatprep.subr.mxu0 0.0
    %1428 = vmatpush1.msra.mxu0 0.0
    %1429 = vmatprep.subr.mxu0 0.0
    %1430 = vmatpush1.msra.mxu0 0.0
    %1431 = vmatprep.subr.mxu0 0.0
    %1432 = vmatpush1.msra.mxu0 0.0
    %1433 = vmatprep.subr.mxu0 0.0
    %1434 = vmatpush1.msra.mxu0 0.0
    %1435 = vmatprep.subr.mxu0 0.0
    %1436 = vmatpush1.msra.mxu0 0.0
    %1437 = vmatprep.subr.mxu0 0.0
    %1438 = vmatpush1.msra.mxu0 0.0
    %1439 = vmatprep.subr.mxu0 0.0
    %1440 = vmatpush1.msra.mxu0 0.0
    %1441 = vmatprep.subr.mxu0 0.0
    %1442 = vmatpush1.msra.mxu0 0.0
    %1443 = vmatprep.subr.mxu0 0.0
    %1444 = vmatpush1.msra.mxu0 0.0
    %1445 = vmatprep.subr.mxu0 0.0
    %1446 = vmatpush1.msra.mxu0 0.0
    %1447 = vmatprep.subr.mxu0 0.0
    %1448 = vmatpush1.msra.mxu0 0.0
    %1449 = vmatprep.subr.mxu0 0.0
    %1450 = vmatpush1.msra.mxu0 0.0
    %1451 = vmatprep.subr.mxu0 0.0
    %1452 = vmatpush1.msra.mxu0 0.0
    %1453 = vmatprep.subr.mxu0 0.0
    %1454 = vmatpush1.msra.mxu0 0.0
    %1455 = vmatprep.mubr.f32.mxu0 0.0
    %1456 = vmatmul.mubr.f32.gmra.mrb[0].mxu0 %v1390
    %v1457 = vpop.f32.mrb[0].mxu0
    %v1458 = vadd.f32 %v893, %v1457
    %v1459 = vpop.f32.mrb[0].mxu0
    %v1460 = vadd.f32 %v897, %v1459
    %1461 = vdwg.mxu0
    %1462 = vmatprep.subr.mxu0 0.0
    %1463 = vmatpush1.msra.mxu0 %v841
    %1464 = vmatprep.subr.mxu0 0.0
    %1465 = vmatpush1.msra.mxu0 %v844
    %1466 = vmatprep.subr.mxu0 0.0
    %1467 = vmatpush1.msra.mxu0 %v847
    %1468 = vmatprep.subr.mxu0 0.0
    %1469 = vmatpush1.msra.mxu0 %v850
    %1470 = vmatprep.subr.mxu0 0.0
    %1471 = vmatpush1.msra.mxu0 %v853
    %1472 = vmatprep.subr.mxu0 0.0
    %1473 = vmatpush1.msra.mxu0 %v856
    %1474 = vmatprep.subr.mxu0 0.0
    %1475 = vmatpush1.msra.mxu0 %v859
    %1476 = vmatprep.subr.mxu0 0.0
    %1477 = vmatpush1.msra.mxu0 %v862
    %1478 = vmatprep.subr.mxu0 0.0
    %1479 = vmatpush1.msra.mxu0 %v865
    %1480 = vmatprep.subr.mxu0 0.0
    %1481 = vmatpush1.msra.mxu0 %v868
    %1482 = vmatprep.subr.mxu0 0.0
    %1483 = vmatpush1.msra.mxu0 %v871
    %1484 = vmatprep.subr.mxu0 0.0
    %1485 = vmatpush1.msra.mxu0 %v874
    %1486 = vmatprep.subr.mxu0 0.0
    %1487 = vmatpush1.msra.mxu0 %v877
    %1488 = vmatprep.subr.mxu0 0.0
    %1489 = vmatpush1.msra.mxu0 %v880
    %1490 = vmatprep.subr.mxu0 0.0
    %1491 = vmatpush1.msra.mxu0 %v883
    %1492 = vmatprep.subr.mxu0 0.0
    %1493 = vmatpush1.msra.mxu0 %v886
    %1494 = vmatprep.subr.mxu0 0.0
    %1495 = vmatpush1.msra.mxu0 0.0
    %1496 = vmatprep.subr.mxu0 0.0
    %1497 = vmatpush1.msra.mxu0 0.0
    %1498 = vmatprep.subr.mxu0 0.0
    %1499 = vmatpush1.msra.mxu0 0.0
    %1500 = vmatprep.subr.mxu0 0.0
    %1501 = vmatpush1.msra.mxu0 0.0
    %1502 = vmatprep.subr.mxu0 0.0
    %1503 = vmatpush1.msra.mxu0 0.0
    %1504 = vmatprep.subr.mxu0 0.0
    %1505 = vmatpush1.msra.mxu0 0.0
    %1506 = vmatprep.subr.mxu0 0.0
    %1507 = vmatpush1.msra.mxu0 0.0
    %1508 = vmatprep.subr.mxu0 0.0
    %1509 = vmatpush1.msra.mxu0 0.0
    %1510 = vmatprep.subr.mxu0 0.0
    %1511 = vmatpush1.msra.mxu0 0.0
    %1512 = vmatprep.subr.mxu0 0.0
    %1513 = vmatpush1.msra.mxu0 0.0
    %1514 = vmatprep.subr.mxu0 0.0
    %1515 = vmatpush1.msra.mxu0 0.0
    %1516 = vmatprep.subr.mxu0 0.0
    %1517 = vmatpush1.msra.mxu0 0.0
    %1518 = vmatprep.subr.mxu0 0.0
    %1519 = vmatpush1.msra.mxu0 0.0
    %1520 = vmatprep.subr.mxu0 0.0
    %1521 = vmatpush1.msra.mxu0 0.0
    %1522 = vmatprep.subr.mxu0 0.0
    %1523 = vmatpush1.msra.mxu0 0.0
    %1524 = vmatprep.subr.mxu0 0.0
    %1525 = vmatpush1.msra.mxu0 0.0
    %1526 = vmatprep.mubr.f32.mxu0 0.0
    %1527 = vmatmul.mubr.f32.gmra.mrb[0].mxu0 %v1390
    %v1528 = vpop.f32.mrb[0].mxu0
    %v1529 = vadd.f32 %v901, %v1528
    %v1530 = vpop.f32.mrb[0].mxu0
    %1531 = vdwg.mxu0
    %v1532 = vadd.f32 %v706, %v1458
    %v1533 = vxor.u32 %v1532, 2147483648
    %v1534 = vmul.f32 %v1533, 1.442695
    %v1535 = vpow.pop %v1534
    %v1536 = vadd.f32 %v1535, 1.0
    %v1537 = vrcp.pop %v1536
    %v1538 = vmul.f32 1.0, %v1537
    %v1539 = vadd.f32 %v708, %v1460
    %v1540 = vxor.u32 %v1539, 2147483648
    %v1541 = vmul.f32 %v1540, 1.442695
    %v1542 = vpow.pop %v1541
    %v1543 = vadd.f32 %v1542, 1.0
    %v1544 = vrcp.pop %v1543
    %v1545 = vmul.f32 1.0, %v1544
    %v1546 = vmul.f32 %v1538, %v1529
    %v1547 = vadd.f32 %v816, %v1546
    %v1548 = vtanh.pop %v1547
    %v1549 = vsub.f32 1.0, %v1545
    %v1550 = vmul.f32 %v1549, %v1548
    %v1551 = vmul.f32 %v1545, %v1390
    %v1552 = vadd.f32 %v1550, %v1551
    %1553 = vmatprep.subr.mxu0 %v840
    %1554 = vmatpush1.msra.mxu0 %v839
    %1555 = vmatprep.subr.mxu0 %v843
    %1556 = vmatpush1.msra.mxu0 %v842
    %1557 = vmatprep.subr.mxu0 %v846
    %1558 = vmatpush1.msra.mxu0 %v845
    %1559 = vmatprep.subr.mxu0 %v849
    %1560 = vmatpush1.msra.mxu0 %v848
    %1561 = vmatprep.subr.mxu0 %v852
    %1562 = vmatpush1.msra.mxu0 %v851
    %1563 = vmatprep.subr.mxu0 %v855
    %1564 = vmatpush1.msra.mxu0 %v854
    %1565 = vmatprep.subr.mxu0 %v858
    %1566 = vmatpush1.msra.mxu0 %v857
    %1567 = vmatprep.subr.mxu0 %v861
    %1568 = vmatpush1.msra.mxu0 %v860
    %1569 = vmatprep.subr.mxu0 %v864
    %1570 = vmatpush1.msra.mxu0 %v863
    %1571 = vmatprep.subr.mxu0 %v867
    %1572 = vmatpush1.msra.mxu0 %v866
    %1573 = vmatprep.subr.mxu0 %v870
    %1574 = vmatpush1.msra.mxu0 %v869
    %1575 = vmatprep.subr.mxu0 %v873
    %1576 = vmatpush1.msra.mxu0 %v872
    %1577 = vmatprep.subr.mxu0 %v876
    %1578 = vmatpush1.msra.mxu0 %v875
    %1579 = vmatprep.subr.mxu0 %v879
    %1580 = vmatpush1.msra.mxu0 %v878
    %1581 = vmatprep.subr.mxu0 %v882
    %1582 = vmatpush1.msra.mxu0 %v881
    %1583 = vmatprep.subr.mxu0 %v885
    %1584 = vmatpush1.msra.mxu0 %v884
    %1585 = vmatprep.subr.mxu0 0.0
    %1586 = vmatpush1.msra.mxu0 0.0
    %1587 = vmatprep.subr.mxu0 0.0
    %1588 = vmatpush1.msra.mxu0 0.0
    %1589 = vmatprep.subr.mxu0 0.0
    %1590 = vmatpush1.msra.mxu0 0.0
    %1591 = vmatprep.subr.mxu0 0.0
    %1592 = vmatpush1.msra.mxu0 0.0
    %1593 = vmatprep.subr.mxu0 0.0
    %1594 = vmatpush1.msra.mxu0 0.0
    %1595 = vmatprep.subr.mxu0 0.0
    %1596 = vmatpush1.msra.mxu0 0.0
    %1597 = vmatprep.subr.mxu0 0.0
    %1598 = vmatpush1.msra.mxu0 0.0
    %1599 = vmatprep.subr.mxu0 0.0
    %1600 = vmatpush1.msra.mxu0 0.0
    %1601 = vmatprep.subr.mxu0 0.0
    %1602 = vmatpush1.msra.mxu0 0.0
    %1603 = vmatprep.subr.mxu0 0.0
    %1604 = vmatpush1.msra.mxu0 0.0
    %1605 = vmatprep.subr.mxu0 0.0
    %1606 = vmatpush1.msra.mxu0 0.0
    %1607 = vmatprep.subr.mxu0 0.0
    %1608 = vmatpush1.msra.mxu0 0.0
    %1609 = vmatprep.subr.mxu0 0.0
    %1610 = vmatpush1.msra.mxu0 0.0
    %1611 = vmatprep.subr.mxu0 0.0
    %1612 = vmatpush1.msra.mxu0 0.0
    %1613 = vmatprep.subr.mxu0 0.0
    %1614 = vmatpush1.msra.mxu0 0.0
    %1615 = vmatprep.subr.mxu0 0.0
    %1616 = vmatpush1.msra.mxu0 0.0
    %1617 = vmatprep.mubr.f32.mxu0 0.0
    %1618 = vmatmul.mubr.f32.gmra.mrb[0].mxu0 %v1552
    %v1619 = vpop.f32.mrb[0].mxu0
    %v1620 = vadd.f32 %v893, %v1619
    %v1621 = vpop.f32.mrb[0].mxu0
    %v1622 = vadd.f32 %v897, %v1621
    %1623 = vdwg.mxu0
    %1624 = vmatprep.subr.mxu0 0.0
    %1625 = vmatpush1.msra.mxu0 %v841
    %1626 = vmatprep.subr.mxu0 0.0
    %1627 = vmatpush1.msra.mxu0 %v844
    %1628 = vmatprep.subr.mxu0 0.0
    %1629 = vmatpush1.msra.mxu0 %v847
    %1630 = vmatprep.subr.mxu0 0.0
    %1631 = vmatpush1.msra.mxu0 %v850
    %1632 = vmatprep.subr.mxu0 0.0
    %1633 = vmatpush1.msra.mxu0 %v853
    %1634 = vmatprep.subr.mxu0 0.0
    %1635 = vmatpush1.msra.mxu0 %v856
    %1636 = vmatprep.subr.mxu0 0.0
    %1637 = vmatpush1.msra.mxu0 %v859
    %1638 = vmatprep.subr.mxu0 0.0
    %1639 = vmatpush1.msra.mxu0 %v862
    %1640 = vmatprep.subr.mxu0 0.0
    %1641 = vmatpush1.msra.mxu0 %v865
    %1642 = vmatprep.subr.mxu0 0.0
    %1643 = vmatpush1.msra.mxu0 %v868
    %1644 = vmatprep.subr.mxu0 0.0
    %1645 = vmatpush1.msra.mxu0 %v871
    %1646 = vmatprep.subr.mxu0 0.0
    %1647 = vmatpush1.msra.mxu0 %v874
    %1648 = vmatprep.subr.mxu0 0.0
    %1649 = vmatpush1.msra.mxu0 %v877
    %1650 = vmatprep.subr.mxu0 0.0
    %1651 = vmatpush1.msra.mxu0 %v880
    %1652 = vmatprep.subr.mxu0 0.0
    %1653 = vmatpush1.msra.mxu0 %v883
    %1654 = vmatprep.subr.mxu0 0.0
    %1655 = vmatpush1.msra.mxu0 %v886
    %1656 = vmatprep.subr.mxu0 0.0
    %1657 = vmatpush1.msra.mxu0 0.0
    %1658 = vmatprep.subr.mxu0 0.0
    %1659 = vmatpush1.msra.mxu0 0.0
    %1660 = vmatprep.subr.mxu0 0.0
    %1661 = vmatpush1.msra.mxu0 0.0
    %1662 = vmatprep.subr.mxu0 0.0
    %1663 = vmatpush1.msra.mxu0 0.0
    %1664 = vmatprep.subr.mxu0 0.0
    %1665 = vmatpush1.msra.mxu0 0.0
    %1666 = vmatprep.subr.mxu0 0.0
    %1667 = vmatpush1.msra.mxu0 0.0
    %1668 = vmatprep.subr.mxu0 0.0
    %1669 = vmatpush1.msra.mxu0 0.0
    %1670 = vmatprep.subr.mxu0 0.0
    %1671 = vmatpush1.msra.mxu0 0.0
    %1672 = vmatprep.subr.mxu0 0.0
    %1673 = vmatpush1.msra.mxu0 0.0
    %1674 = vmatprep.subr.mxu0 0.0
    %1675 = vmatpush1.msra.mxu0 0.0
    %1676 = vmatprep.subr.mxu0 0.0
    %1677 = vmatpush1.msra.mxu0 0.0
    %1678 = vmatprep.subr.mxu0 0.0
    %1679 = vmatpush1.msra.mxu0 0.0
    %1680 = vmatprep.subr.mxu0 0.0
    %1681 = vmatpush1.msra.mxu0 0.0
    %1682 = vmatprep.subr.mxu0 0.0
    %1683 = vmatpush1.msra.mxu0 0.0
    %1684 = vmatprep.subr.mxu0 0.0
    %1685 = vmatpush1.msra.mxu0 0.0
    %1686 = vmatprep.subr.mxu0 0.0
    %1687 = vmatpush1.msra.mxu0 0.0
    %1688 = vmatprep.mubr.f32.mxu0 0.0
    %1689 = vmatmul.mubr.f32.gmra.mrb[0].mxu0 %v1552
    %v1690 = vpop.f32.mrb[0].mxu0
    %v1691 = vadd.f32 %v901, %v1690
    %v1692 = vpop.f32.mrb[0].mxu0
    %1693 = vdwg.mxu0
    %v1694 = vadd.f32 %v712, %v1620
    %v1695 = vxor.u32 %v1694, 2147483648
    %v1696 = vmul.f32 %v1695, 1.442695
    %v1697 = vpow.pop %v1696
    %v1698 = vadd.f32 %v1697, 1.0
    %v1699 = vrcp.pop %v1698
    %v1700 = vmul.f32 1.0, %v1699
    %v1701 = vadd.f32 %v714, %v1622
    %v1702 = vxor.u32 %v1701, 2147483648
    %v1703 = vmul.f32 %v1702, 1.442695
    %v1704 = vpow.pop %v1703
    %v1705 = vadd.f32 %v1704, 1.0
    %v1706 = vrcp.pop %v1705
    %v1707 = vmul.f32 1.0, %v1706
    %v1708 = vmul.f32 %v1700, %v1691
    %v1709 = vadd.f32 %v821, %v1708
    %v1710 = vtanh.pop %v1709
    %v1711 = vsub.f32 1.0, %v1707
    %v1712 = vmul.f32 %v1711, %v1710
    %v1713 = vmul.f32 %v1707, %v1552
    %v1714 = vadd.f32 %v1712, %v1713
    %1715 = vmatprep.subr.mxu0 %v840
    %1716 = vmatpush1.msra.mxu0 %v839
    %1717 = vmatprep.subr.mxu0 %v843
    %1718 = vmatpush1.msra.mxu0 %v842
    %1719 = vmatprep.subr.mxu0 %v846
    %1720 = vmatpush1.msra.mxu0 %v845
    %1721 = vmatprep.subr.mxu0 %v849
    %1722 = vmatpush1.msra.mxu0 %v848
    %1723 = vmatprep.subr.mxu0 %v852
    %1724 = vmatpush1.msra.mxu0 %v851
    %1725 = vmatprep.subr.mxu0 %v855
    %1726 = vmatpush1.msra.mxu0 %v854
    %1727 = vmatprep.subr.mxu0 %v858
    %1728 = vmatpush1.msra.mxu0 %v857
    %1729 = vmatprep.subr.mxu0 %v861
    %1730 = vmatpush1.msra.mxu0 %v860
    %1731 = vmatprep.subr.mxu0 %v864
    %1732 = vmatpush1.msra.mxu0 %v863
    %1733 = vmatprep.subr.mxu0 %v867
    %1734 = vmatpush1.msra.mxu0 %v866
    %1735 = vmatprep.subr.mxu0 %v870
    %1736 = vmatpush1.msra.mxu0 %v869
    %1737 = vmatprep.subr.mxu0 %v873
    %1738 = vmatpush1.msra.mxu0 %v872
    %1739 = vmatprep.subr.mxu0 %v876
    %1740 = vmatpush1.msra.mxu0 %v875
    %1741 = vmatprep.subr.mxu0 %v879
    %1742 = vmatpush1.msra.mxu0 %v878
    %1743 = vmatprep.subr.mxu0 %v882
    %1744 = vmatpush1.msra.mxu0 %v881
    %1745 = vmatprep.subr.mxu0 %v885
    %1746 = vmatpush1.msra.mxu0 %v884
    %1747 = vmatprep.subr.mxu0 0.0
    %1748 = vmatpush1.msra.mxu0 0.0
    %1749 = vmatprep.subr.mxu0 0.0
    %1750 = vmatpush1.msra.mxu0 0.0
    %1751 = vmatprep.subr.mxu0 0.0
    %1752 = vmatpush1.msra.mxu0 0.0
    %1753 = vmatprep.subr.mxu0 0.0
    %1754 = vmatpush1.msra.mxu0 0.0
    %1755 = vmatprep.subr.mxu0 0.0
    %1756 = vmatpush1.msra.mxu0 0.0
    %1757 = vmatprep.subr.mxu0 0.0
    %1758 = vmatpush1.msra.mxu0 0.0
    %1759 = vmatprep.subr.mxu0 0.0
    %1760 = vmatpush1.msra.mxu0 0.0
    %1761 = vmatprep.subr.mxu0 0.0
    %1762 = vmatpush1.msra.mxu0 0.0
    %1763 = vmatprep.subr.mxu0 0.0
    %1764 = vmatpush1.msra.mxu0 0.0
    %1765 = vmatprep.subr.mxu0 0.0
    %1766 = vmatpush1.msra.mxu0 0.0
    %1767 = vmatprep.subr.mxu0 0.0
    %1768 = vmatpush1.msra.mxu0 0.0
    %1769 = vmatprep.subr.mxu0 0.0
    %1770 = vmatpush1.msra.mxu0 0.0
    %1771 = vmatprep.subr.mxu0 0.0
    %1772 = vmatpush1.msra.mxu0 0.0
    %1773 = vmatprep.subr.mxu0 0.0
    %1774 = vmatpush1.msra.mxu0 0.0
    %1775 = vmatprep.subr.mxu0 0.0
    %1776 = vmatpush1.msra.mxu0 0.0
    %1777 = vmatprep.subr.mxu0 0.0
    %1778 = vmatpush1.msra.mxu0 0.0
    %1779 = vmatprep.mubr.f32.mxu0 0.0
    %1780 = vmatmul.mubr.f32.gmra.mrb[0].mxu0 %v1714
    %v1781 = vpop.f32.mrb[0].mxu0
    %v1782 = vadd.f32 %v893, %v1781
    %v1783 = vpop.f32.mrb[0].mxu0
    %v1784 = vadd.f32 %v897, %v1783
    %1785 = vdwg.mxu0
    %1786 = vmatprep.subr.mxu0 0.0
    %1787 = vmatpush1.msra.mxu0 %v841
    %1788 = vmatprep.subr.mxu0 0.0
    %1789 = vmatpush1.msra.mxu0 %v844
    %1790 = vmatprep.subr.mxu0 0.0
    %1791 = vmatpush1.msra.mxu0 %v847
    %1792 = vmatprep.subr.mxu0 0.0
    %1793 = vmatpush1.msra.mxu0 %v850
    %1794 = vmatprep.subr.mxu0 0.0
    %1795 = vmatpush1.msra.mxu0 %v853
    %1796 = vmatprep.subr.mxu0 0.0
    %1797 = vmatpush1.msra.mxu0 %v856
    %1798 = vmatprep.subr.mxu0 0.0
    %1799 = vmatpush1.msra.mxu0 %v859
    %1800 = vmatprep.subr.mxu0 0.0
    %1801 = vmatpush1.msra.mxu0 %v862
    %1802 = vmatprep.subr.mxu0 0.0
    %1803 = vmatpush1.msra.mxu0 %v865
    %1804 = vmatprep.subr.mxu0 0.0
    %1805 = vmatpush1.msra.mxu0 %v868
    %1806 = vmatprep.subr.mxu0 0.0
    %1807 = vmatpush1.msra.mxu0 %v871
    %1808 = vmatprep.subr.mxu0 0.0
    %1809 = vmatpush1.msra.mxu0 %v874
    %1810 = vmatprep.subr.mxu0 0.0
    %1811 = vmatpush1.msra.mxu0 %v877
    %1812 = vmatprep.subr.mxu0 0.0
    %1813 = vmatpush1.msra.mxu0 %v880
    %1814 = vmatprep.subr.mxu0 0.0
    %1815 = vmatpush1.msra.mxu0 %v883
    %1816 = vmatprep.subr.mxu0 0.0
    %1817 = vmatpush1.msra.mxu0 %v886
    %1818 = vmatprep.subr.mxu0 0.0
    %1819 = vmatpush1.msra.mxu0 0.0
    %1820 = vmatprep.subr.mxu0 0.0
    %1821 = vmatpush1.msra.mxu0 0.0
    %1822 = vmatprep.subr.mxu0 0.0
    %1823 = vmatpush1.msra.mxu0 0.0
    %1824 = vmatprep.subr.mxu0 0.0
    %1825 = vmatpush1.msra.mxu0 0.0
    %1826 = vmatprep.subr.mxu0 0.0
    %1827 = vmatpush1.msra.mxu0 0.0
    %1828 = vmatprep.subr.mxu0 0.0
    %1829 = vmatpush1.msra.mxu0 0.0
    %1830 = vmatprep.subr.mxu0 0.0
    %1831 = vmatpush1.msra.mxu0 0.0
    %1832 = vmatprep.subr.mxu0 0.0
    %1833 = vmatpush1.msra.mxu0 0.0
    %1834 = vmatprep.subr.mxu0 0.0
    %1835 = vmatpush1.msra.mxu0 0.0
    %1836 = vmatprep.subr.mxu0 0.0
    %1837 = vmatpush1.msra.mxu0 0.0
    %1838 = vmatprep.subr.mxu0 0.0
    %1839 = vmatpush1.msra.mxu0 0.0
    %1840 = vmatprep.subr.mxu0 0.0
    %1841 = vmatpush1.msra.mxu0 0.0
    %1842 = vmatprep.subr.mxu0 0.0
    %1843 = vmatpush1.msra.mxu0 0.0
    %1844 = vmatprep.subr.mxu0 0.0
    %1845 = vmatpush1.msra.mxu0 0.0
    %1846 = vmatprep.subr.mxu0 0.0
    %1847 = vmatpush1.msra.mxu0 0.0
    %1848 = vmatprep.subr.mxu0 0.0
    %1849 = vmatpush1.msra.mxu0 0.0
    %1850 = vmatprep.mubr.f32.mxu0 0.0
    %1851 = vmatmul.mubr.f32.gmra.mrb[0].mxu0 %v1714
    %v1852 = vpop.f32.mrb[0].mxu0
    %v1853 = vadd.f32 %v901, %v1852
    %v1854 = vpop.f32.mrb[0].mxu0
    %1855 = vdwg.mxu0
    %v1856 = vadd.f32 %v718, %v1782
    %v1857 = vxor.u32 %v1856, 2147483648
    %v1858 = vmul.f32 %v1857, 1.442695
    %v1859 = vpow.pop %v1858
    %v1860 = vadd.f32 %v1859, 1.0
    %v1861 = vrcp.pop %v1860
    %v1862 = vmul.f32 1.0, %v1861
    %v1863 = vadd.f32 %v720, %v1784
    %v1864 = vxor.u32 %v1863, 2147483648
    %v1865 = vmul.f32 %v1864, 1.442695
    %v1866 = vpow.pop %v1865
    %v1867 = vadd.f32 %v1866, 1.0
    %v1868 = vrcp.pop %v1867
    %v1869 = vmul.f32 1.0, %v1868
    %v1870 = vmul.f32 %v1862, %v1853
    %v1871 = vadd.f32 %v826, %v1870
    %v1872 = vtanh.pop %v1871
    %v1873 = vsub.f32 1.0, %v1869
    %v1874 = vmul.f32 %v1873, %v1872
    %v1875 = vmul.f32 %v1869, %v1714
    %v1876 = vadd.f32 %v1874, %v1875
    %1877 = vmatprep.subr.mxu0 %v840
    %1878 = vmatpush1.msra.mxu0 %v839
    %1879 = vmatprep.subr.mxu0 %v843
    %1880 = vmatpush1.msra.mxu0 %v842
    %1881 = vmatprep.subr.mxu0 %v846
    %1882 = vmatpush1.msra.mxu0 %v845
    %1883 = vmatprep.subr.mxu0 %v849
    %1884 = vmatpush1.msra.mxu0 %v848
    %1885 = vmatprep.subr.mxu0 %v852
    %1886 = vmatpush1.msra.mxu0 %v851
    %1887 = vmatprep.subr.mxu0 %v855
    %1888 = vmatpush1.msra.mxu0 %v854
    %1889 = vmatprep.subr.mxu0 %v858
    %1890 = vmatpush1.msra.mxu0 %v857
    %1891 = vmatprep.subr.mxu0 %v861
    %1892 = vmatpush1.msra.mxu0 %v860
    %1893 = vmatprep.subr.mxu0 %v864
    %1894 = vmatpush1.msra.mxu0 %v863
    %1895 = vmatprep.subr.mxu0 %v867
    %1896 = vmatpush1.msra.mxu0 %v866
    %1897 = vmatprep.subr.mxu0 %v870
    %1898 = vmatpush1.msra.mxu0 %v869
    %1899 = vmatprep.subr.mxu0 %v873
    %1900 = vmatpush1.msra.mxu0 %v872
    %1901 = vmatprep.subr.mxu0 %v876
    %1902 = vmatpush1.msra.mxu0 %v875
    %1903 = vmatprep.subr.mxu0 %v879
    %1904 = vmatpush1.msra.mxu0 %v878
    %1905 = vmatprep.subr.mxu0 %v882
    %1906 = vmatpush1.msra.mxu0 %v881
    %1907 = vmatprep.subr.mxu0 %v885
    %1908 = vmatpush1.msra.mxu0 %v884
    %1909 = vmatprep.subr.mxu0 0.0
    %1910 = vmatpush1.msra.mxu0 0.0
    %1911 = vmatprep.subr.mxu0 0.0
    %1912 = vmatpush1.msra.mxu0 0.0
    %1913 = vmatprep.subr.mxu0 0.0
    %1914 = vmatpush1.msra.mxu0 0.0
    %1915 = vmatprep.subr.mxu0 0.0
    %1916 = vmatpush1.msra.mxu0 0.0
    %1917 = vmatprep.subr.mxu0 0.0
    %1918 = vmatpush1.msra.mxu0 0.0
    %1919 = vmatprep.subr.mxu0 0.0
    %1920 = vmatpush1.msra.mxu0 0.0
    %1921 = vmatprep.subr.mxu0 0.0
    %1922 = vmatpush1.msra.mxu0 0.0
    %1923 = vmatprep.subr.mxu0 0.0
    %1924 = vmatpush1.msra.mxu0 0.0
    %1925 = vmatprep.subr.mxu0 0.0
    %1926 = vmatpush1.msra.mxu0 0.0
    %1927 = vmatprep.subr.mxu0 0.0
    %1928 = vmatpush1.msra.mxu0 0.0
    %1929 = vmatprep.subr.mxu0 0.0
    %1930 = vmatpush1.msra.mxu0 0.0
    %1931 = vmatprep.subr.mxu0 0.0
    %1932 = vmatpush1.msra.mxu0 0.0
    %1933 = vmatprep.subr.mxu0 0.0
    %1934 = vmatpush1.msra.mxu0 0.0
    %1935 = vmatprep.subr.mxu0 0.0
    %1936 = vmatpush1.msra.mxu0 0.0
    %1937 = vmatprep.subr.mxu0 0.0
    %1938 = vmatpush1.msra.mxu0 0.0
    %1939 = vmatprep.subr.mxu0 0.0
    %1940 = vmatpush1.msra.mxu0 0.0
    %1941 = vmatprep.mubr.f32.mxu0 0.0
    %1942 = vmatmul.mubr.f32.gmra.mrb[0].mxu0 %v1876
    %v1943 = vpop.f32.mrb[0].mxu0
    %v1944 = vadd.f32 %v893, %v1943
    %v1945 = vpop.f32.mrb[0].mxu0
    %v1946 = vadd.f32 %v897, %v1945
    %1947 = vdwg.mxu0
    %1948 = vmatprep.subr.mxu0 0.0
    %1949 = vmatpush1.msra.mxu0 %v841
    %1950 = vmatprep.subr.mxu0 0.0
    %1951 = vmatpush1.msra.mxu0 %v844
    %1952 = vmatprep.subr.mxu0 0.0
    %1953 = vmatpush1.msra.mxu0 %v847
    %1954 = vmatprep.subr.mxu0 0.0
    %1955 = vmatpush1.msra.mxu0 %v850
    %1956 = vmatprep.subr.mxu0 0.0
    %1957 = vmatpush1.msra.mxu0 %v853
    %1958 = vmatprep.subr.mxu0 0.0
    %1959 = vmatpush1.msra.mxu0 %v856
    %1960 = vmatprep.subr.mxu0 0.0
    %1961 = vmatpush1.msra.mxu0 %v859
    %1962 = vmatprep.subr.mxu0 0.0
    %1963 = vmatpush1.msra.mxu0 %v862
    %1964 = vmatprep.subr.mxu0 0.0
    %1965 = vmatpush1.msra.mxu0 %v865
    %1966 = vmatprep.subr.mxu0 0.0
    %1967 = vmatpush1.msra.mxu0 %v868
    %1968 = vmatprep.subr.mxu0 0.0
    %1969 = vmatpush1.msra.mxu0 %v871
    %1970 = vmatprep.subr.mxu0 0.0
    %1971 = vmatpush1.msra.mxu0 %v874
    %1972 = vmatprep.subr.mxu0 0.0
    %1973 = vmatpush1.msra.mxu0 %v877
    %1974 = vmatprep.subr.mxu0 0.0
    %1975 = vmatpush1.msra.mxu0 %v880
    %1976 = vmatprep.subr.mxu0 0.0
    %1977 = vmatpush1.msra.mxu0 %v883
    %1978 = vmatprep.subr.mxu0 0.0
    %1979 = vmatpush1.msra.mxu0 %v886
    %1980 = vmatprep.subr.mxu0 0.0
    %1981 = vmatpush1.msra.mxu0 0.0
    %1982 = vmatprep.subr.mxu0 0.0
    %1983 = vmatpush1.msra.mxu0 0.0
    %1984 = vmatprep.subr.mxu0 0.0
    %1985 = vmatpush1.msra.mxu0 0.0
    %1986 = vmatprep.subr.mxu0 0.0
    %1987 = vmatpush1.msra.mxu0 0.0
    %1988 = vmatprep.subr.mxu0 0.0
    %1989 = vmatpush1.msra.mxu0 0.0
    %1990 = vmatprep.subr.mxu0 0.0
    %1991 = vmatpush1.msra.mxu0 0.0
    %1992 = vmatprep.subr.mxu0 0.0
    %1993 = vmatpush1.msra.mxu0 0.0
    %1994 = vmatprep.subr.mxu0 0.0
    %1995 = vmatpush1.msra.mxu0 0.0
    %1996 = vmatprep.subr.mxu0 0.0
    %1997 = vmatpush1.msra.mxu0 0.0
    %1998 = vmatprep.subr.mxu0 0.0
    %1999 = vmatpush1.msra.mxu0 0.0
    %2000 = vmatprep.subr.mxu0 0.0
    %2001 = vmatpush1.msra.mxu0 0.0
    %2002 = vmatprep.subr.mxu0 0.0
    %2003 = vmatpush1.msra.mxu0 0.0
    %2004 = vmatprep.subr.mxu0 0.0
    %2005 = vmatpush1.msra.mxu0 0.0
    %2006 = vmatprep.subr.mxu0 0.0
    %2007 = vmatpush1.msra.mxu0 0.0
    %2008 = vmatprep.subr.mxu0 0.0
    %2009 = vmatpush1.msra.mxu0 0.0
    %2010 = vmatprep.subr.mxu0 0.0
    %2011 = vmatpush1.msra.mxu0 0.0
    %2012 = vmatprep.mubr.f32.mxu0 0.0
    %2013 = vmatmul.mubr.f32.gmra.mrb[0].mxu0 %v1876
    %v2014 = vpop.f32.mrb[0].mxu0
    %v2015 = vadd.f32 %v901, %v2014
    %v2016 = vpop.f32.mrb[0].mxu0
    %2017 = vdwg.mxu0
    %v2018 = vadd.f32 %v724, %v1944
    %v2019 = vxor.u32 %v2018, 2147483648
    %v2020 = vmul.f32 %v2019, 1.442695
    %v2021 = vpow.pop %v2020
    %v2022 = vadd.f32 %v2021, 1.0
    %v2023 = vrcp.pop %v2022
    %v2024 = vmul.f32 1.0, %v2023
    %v2025 = vadd.f32 %v726, %v1946
    %v2026 = vxor.u32 %v2025, 2147483648
    %v2027 = vmul.f32 %v2026, 1.442695
    %v2028 = vpow.pop %v2027
    %v2029 = vadd.f32 %v2028, 1.0
    %v2030 = vrcp.pop %v2029
    %v2031 = vmul.f32 1.0, %v2030
    %v2032 = vmul.f32 %v2024, %v2015
    %v2033 = vadd.f32 %v831, %v2032
    %v2034 = vtanh.pop %v2033
    %v2035 = vsub.f32 1.0, %v2031
    %v2036 = vmul.f32 %v2035, %v2034
    %v2037 = vmul.f32 %v2031, %v1876
    %v2038 = vadd.f32 %v2036, %v2037
    %2039 = vmatprep.subr.mxu0 %v840
    %2040 = vmatpush1.msra.mxu0 %v839
    %2041 = vmatprep.subr.mxu0 %v843
    %2042 = vmatpush1.msra.mxu0 %v842
    %2043 = vmatprep.subr.mxu0 %v846
    %2044 = vmatpush1.msra.mxu0 %v845
    %2045 = vmatprep.subr.mxu0 %v849
    %2046 = vmatpush1.msra.mxu0 %v848
    %2047 = vmatprep.subr.mxu0 %v852
    %2048 = vmatpush1.msra.mxu0 %v851
    %2049 = vmatprep.subr.mxu0 %v855
    %2050 = vmatpush1.msra.mxu0 %v854
    %2051 = vmatprep.subr.mxu0 %v858
    %2052 = vmatpush1.msra.mxu0 %v857
    %2053 = vmatprep.subr.mxu0 %v861
    %2054 = vmatpush1.msra.mxu0 %v860
    %2055 = vmatprep.subr.mxu0 %v864
    %2056 = vmatpush1.msra.mxu0 %v863
    %2057 = vmatprep.subr.mxu0 %v867
    %2058 = vmatpush1.msra.mxu0 %v866
    %2059 = vmatprep.subr.mxu0 %v870
    %2060 = vmatpush1.msra.mxu0 %v869
    %2061 = vmatprep.subr.mxu0 %v873
    %2062 = vmatpush1.msra.mxu0 %v872
    %2063 = vmatprep.subr.mxu0 %v876
    %2064 = vmatpush1.msra.mxu0 %v875
    %2065 = vmatprep.subr.mxu0 %v879
    %2066 = vmatpush1.msra.mxu0 %v878
    %2067 = vmatprep.subr.mxu0 %v882
    %2068 = vmatpush1.msra.mxu0 %v881
    %2069 = vmatprep.subr.mxu0 %v885
    %2070 = vmatpush1.msra.mxu0 %v884
    %2071 = vmatprep.subr.mxu0 0.0
    %2072 = vmatpush1.msra.mxu0 0.0
    %2073 = vmatprep.subr.mxu0 0.0
    %2074 = vmatpush1.msra.mxu0 0.0
    %2075 = vmatprep.subr.mxu0 0.0
    %2076 = vmatpush1.msra.mxu0 0.0
    %2077 = vmatprep.subr.mxu0 0.0
    %2078 = vmatpush1.msra.mxu0 0.0
    %2079 = vmatprep.subr.mxu0 0.0
    %2080 = vmatpush1.msra.mxu0 0.0
    %2081 = vmatprep.subr.mxu0 0.0
    %2082 = vmatpush1.msra.mxu0 0.0
    %2083 = vmatprep.subr.mxu0 0.0
    %2084 = vmatpush1.msra.mxu0 0.0
    %2085 = vmatprep.subr.mxu0 0.0
    %2086 = vmatpush1.msra.mxu0 0.0
    %2087 = vmatprep.subr.mxu0 0.0
    %2088 = vmatpush1.msra.mxu0 0.0
    %2089 = vmatprep.subr.mxu0 0.0
    %2090 = vmatpush1.msra.mxu0 0.0
    %2091 = vmatprep.subr.mxu0 0.0
    %2092 = vmatpush1.msra.mxu0 0.0
    %2093 = vmatprep.subr.mxu0 0.0
    %2094 = vmatpush1.msra.mxu0 0.0
    %2095 = vmatprep.subr.mxu0 0.0
    %2096 = vmatpush1.msra.mxu0 0.0
    %2097 = vmatprep.subr.mxu0 0.0
    %2098 = vmatpush1.msra.mxu0 0.0
    %2099 = vmatprep.subr.mxu0 0.0
    %2100 = vmatpush1.msra.mxu0 0.0
    %2101 = vmatprep.subr.mxu0 0.0
    %2102 = vmatpush1.msra.mxu0 0.0
    %2103 = vmatprep.mubr.f32.mxu0 0.0
    %2104 = vmatmul.mubr.f32.gmra.mrb[0].mxu0 %v2038
    %v2105 = vpop.f32.mrb[0].mxu0
    %v2106 = vadd.f32 %v893, %v2105
    %v2107 = vpop.f32.mrb[0].mxu0
    %v2108 = vadd.f32 %v897, %v2107
    %2109 = vdwg.mxu0
    %2110 = vmatprep.subr.mxu0 0.0
    %2111 = vmatpush1.msra.mxu0 %v841
    %2112 = vmatprep.subr.mxu0 0.0
    %2113 = vmatpush1.msra.mxu0 %v844
    %2114 = vmatprep.subr.mxu0 0.0
    %2115 = vmatpush1.msra.mxu0 %v847
    %2116 = vmatprep.subr.mxu0 0.0
    %2117 = vmatpush1.msra.mxu0 %v850
    %2118 = vmatprep.subr.mxu0 0.0
    %2119 = vmatpush1.msra.mxu0 %v853
    %2120 = vmatprep.subr.mxu0 0.0
    %2121 = vmatpush1.msra.mxu0 %v856
    %2122 = vmatprep.subr.mxu0 0.0
    %2123 = vmatpush1.msra.mxu0 %v859
    %2124 = vmatprep.subr.mxu0 0.0
    %2125 = vmatpush1.msra.mxu0 %v862
    %2126 = vmatprep.subr.mxu0 0.0
    %2127 = vmatpush1.msra.mxu0 %v865
    %2128 = vmatprep.subr.mxu0 0.0
    %2129 = vmatpush1.msra.mxu0 %v868
    %2130 = vmatprep.subr.mxu0 0.0
    %2131 = vmatpush1.msra.mxu0 %v871
    %2132 = vmatprep.subr.mxu0 0.0
    %2133 = vmatpush1.msra.mxu0 %v874
    %2134 = vmatprep.subr.mxu0 0.0
    %2135 = vmatpush1.msra.mxu0 %v877
    %2136 = vmatprep.subr.mxu0 0.0
    %2137 = vmatpush1.msra.mxu0 %v880
    %2138 = vmatprep.subr.mxu0 0.0
    %2139 = vmatpush1.msra.mxu0 %v883
    %2140 = vmatprep.subr.mxu0 0.0
    %2141 = vmatpush1.msra.mxu0 %v886
    %2142 = vmatprep.subr.mxu0 0.0
    %2143 = vmatpush1.msra.mxu0 0.0
    %2144 = vmatprep.subr.mxu0 0.0
    %2145 = vmatpush1.msra.mxu0 0.0
    %2146 = vmatprep.subr.mxu0 0.0
    %2147 = vmatpush1.msra.mxu0 0.0
    %2148 = vmatprep.subr.mxu0 0.0
    %2149 = vmatpush1.msra.mxu0 0.0
    %2150 = vmatprep.subr.mxu0 0.0
    %2151 = vmatpush1.msra.mxu0 0.0
    %2152 = vmatprep.subr.mxu0 0.0
    %2153 = vmatpush1.msra.mxu0 0.0
    %2154 = vmatprep.subr.mxu0 0.0
    %2155 = vmatpush1.msra.mxu0 0.0
    %2156 = vmatprep.subr.mxu0 0.0
    %2157 = vmatpush1.msra.mxu0 0.0
    %2158 = vmatprep.subr.mxu0 0.0
    %2159 = vmatpush1.msra.mxu0 0.0
    %2160 = vmatprep.subr.mxu0 0.0
    %2161 = vmatpush1.msra.mxu0 0.0
    %2162 = vmatprep.subr.mxu0 0.0
    %2163 = vmatpush1.msra.mxu0 0.0
    %2164 = vmatprep.subr.mxu0 0.0
    %2165 = vmatpush1.msra.mxu0 0.0
    %2166 = vmatprep.subr.mxu0 0.0
    %2167 = vmatpush1.msra.mxu0 0.0
    %2168 = vmatprep.subr.mxu0 0.0
    %2169 = vmatpush1.msra.mxu0 0.0
    %2170 = vmatprep.subr.mxu0 0.0
    %2171 = vmatpush1.msra.mxu0 0.0
    %2172 = vmatprep.subr.mxu0 0.0
    %2173 = vmatpush1.msra.mxu0 0.0
    %2174 = vmatprep.mubr.f32.mxu0 0.0
    %2175 = vmatmul.mubr.f32.gmra.mrb[0].mxu0 %v2038
    %v2176 = vpop.f32.mrb[0].mxu0
    %v2177 = vadd.f32 %v901, %v2176
    %v2178 = vpop.f32.mrb[0].mxu0
    %2179 = vdwg.mxu0
    %v2180 = vadd.f32 %v730, %v2106
    %v2181 = vxor.u32 %v2180, 2147483648
    %v2182 = vmul.f32 %v2181, 1.442695
    %v2183 = vpow.pop %v2182
    %v2184 = vadd.f32 %v2183, 1.0
    %v2185 = vrcp.pop %v2184
    %v2186 = vmul.f32 1.0, %v2185
    %v2187 = vadd.f32 %v732, %v2108
    %v2188 = vxor.u32 %v2187, 2147483648
    %v2189 = vmul.f32 %v2188, 1.442695
    %v2190 = vpow.pop %v2189
    %v2191 = vadd.f32 %v2190, 1.0
    %v2192 = vrcp.pop %v2191
    %v2193 = vmul.f32 1.0, %v2192
    %v2194 = vmul.f32 %v2186, %v2177
    %v2195 = vadd.f32 %v836, %v2194
    %v2196 = vtanh.pop %v2195
    %v2197 = vsub.f32 1.0, %v2193
    %v2198 = vmul.f32 %v2197, %v2196
    %v2199 = vmul.f32 %v2193, %v2038
    %v2200 = vadd.f32 %v2198, %v2199
    %2201 = vst [vmem:[%s15] sm:$0xff] %v2200
    %v2202 = vld [vmem:[%s12] sm:$0xff]
    %v2203 = vld [vmem:[%s12 + $0x8] sm:$0xff]
    %v2204 = vld [vmem:[%s12 + $0x10] sm:$0xff]
    %v2205 = vld [vmem:[%s12 + $0x18] sm:$0xff]
    %v2206 = vld [vmem:[%s12 + $0x20] sm:$0xff]
    %v2207 = vld [vmem:[%s12 + $0x28] sm:$0xff]
    %v2208 = vld [vmem:[%s12 + $0x30] sm:$0xff]
    %v2209 = vld [vmem:[%s12 + $0x38] sm:$0xff]
    %v2210 = vld [vmem:[%s12 + $0x40] sm:$0xff]
    %v2211 = vld [vmem:[%s12 + $0x48] sm:$0xff]
    %v2212 = vld [vmem:[%s12 + $0x50] sm:$0xff]
    %v2213 = vld [vmem:[%s12 + $0x58] sm:$0xff]
    %v2214 = vld [vmem:[%s12 + $0x60] sm:$0xff]
    %v2215 = vld [vmem:[%s12 + $0x68] sm:$0xff]
    %v2216 = vld [vmem:[%s12 + $0x70] sm:$0xff]
    %v2217 = vld [vmem:[%s12 + $0x78] sm:$0xff]
    %v2218 = vld [vmem:[%s13] sm:$0x1]
    %v2220 = vlaneseq
    %v2221 = vshrl.u32 %v2220, 7
    %v2222 = vsub.s32 0, %v2221
    %v2223 = vrot.slane %v2218, %v2222
    %2225 = vmatprep.subr.mxu0 0.0
    %2226 = vmatpush1.msra.mxu0 %v2202
    %2227 = vmatprep.subr.mxu0 0.0
    %2228 = vmatpush1.msra.mxu0 %v2203
    %2229 = vmatprep.subr.mxu0 0.0
    %2230 = vmatpush1.msra.mxu0 %v2204
    %2231 = vmatprep.subr.mxu0 0.0
    %2232 = vmatpush1.msra.mxu0 %v2205
    %2233 = vmatprep.subr.mxu0 0.0
    %2234 = vmatpush1.msra.mxu0 %v2206
    %2235 = vmatprep.subr.mxu0 0.0
    %2236 = vmatpush1.msra.mxu0 %v2207
    %2237 = vmatprep.subr.mxu0 0.0
    %2238 = vmatpush1.msra.mxu0 %v2208
    %2239 = vmatprep.subr.mxu0 0.0
    %2240 = vmatpush1.msra.mxu0 %v2209
    %2241 = vmatprep.subr.mxu0 0.0
    %2242 = vmatpush1.msra.mxu0 %v2210
    %2243 = vmatprep.subr.mxu0 0.0
    %2244 = vmatpush1.msra.mxu0 %v2211
    %2245 = vmatprep.subr.mxu0 0.0
    %2246 = vmatpush1.msra.mxu0 %v2212
    %2247 = vmatprep.subr.mxu0 0.0
    %2248 = vmatpush1.msra.mxu0 %v2213
    %2249 = vmatprep.subr.mxu0 0.0
    %2250 = vmatpush1.msra.mxu0 %v2214
    %2251 = vmatprep.subr.mxu0 0.0
    %2252 = vmatpush1.msra.mxu0 %v2215
    %2253 = vmatprep.subr.mxu0 0.0
    %2254 = vmatpush1.msra.mxu0 %v2216
    %2255 = vmatprep.subr.mxu0 0.0
    %2256 = vmatpush1.msra.mxu0 %v2217
    %2257 = vmatprep.subr.mxu0 0.0
    %2258 = vmatpush1.msra.mxu0 0.0
    %2259 = vmatprep.subr.mxu0 0.0
    %2260 = vmatpush1.msra.mxu0 0.0
    %2261 = vmatprep.subr.mxu0 0.0
    %2262 = vmatpush1.msra.mxu0 0.0
    %2263 = vmatprep.subr.mxu0 0.0
    %2264 = vmatpush1.msra.mxu0 0.0
    %2265 = vmatprep.subr.mxu0 0.0
    %2266 = vmatpush1.msra.mxu0 0.0
    %2267 = vmatprep.subr.mxu0 0.0
    %2268 = vmatpush1.msra.mxu0 0.0
    %2269 = vmatprep.subr.mxu0 0.0
    %2270 = vmatpush1.msra.mxu0 0.0
    %2271 = vmatprep.subr.mxu0 0.0
    %2272 = vmatpush1.msra.mxu0 0.0
    %2273 = vmatprep.subr.mxu0 0.0
    %2274 = vmatpush1.msra.mxu0 0.0
    %2275 = vmatprep.subr.mxu0 0.0
    %2276 = vmatpush1.msra.mxu0 0.0
    %2277 = vmatprep.subr.mxu0 0.0
    %2278 = vmatpush1.msra.mxu0 0.0
    %2279 = vmatprep.subr.mxu0 0.0
    %2280 = vmatpush1.msra.mxu0 0.0
    %2281 = vmatprep.subr.mxu0 0.0
    %2282 = vmatpush1.msra.mxu0 0.0
    %2283 = vmatprep.subr.mxu0 0.0
    %2284 = vmatpush1.msra.mxu0 0.0
    %2285 = vmatprep.subr.mxu0 0.0
    %2286 = vmatpush1.msra.mxu0 0.0
    %2287 = vmatprep.subr.mxu0 0.0
    %2288 = vmatpush1.msra.mxu0 0.0
    %2289 = vmatprep.mubr.f32.mxu0 0.0
    %2290 = vmatmul.mubr.f32.gmra.mrb[0].mxu0 %v1066
    %v2291 = vpop.f32.mrb[0].mxu0
    %v2292 = vadd.f32 %v2223, %v2291
    %v2293 = vpop.f32.mrb[0].mxu0
    %2294 = vmatprep.mubr.f32.mxu0 0.0
    %2295 = vmatmul.mubr.f32.gmra.mrb[0].mxu0 %v1228
    %v2296 = vpop.f32.mrb[0].mxu0
    %v2297 = vadd.f32 %v2223, %v2296
    %v2298 = vpop.f32.mrb[0].mxu0
    %2299 = vmatprep.mubr.f32.mxu0 0.0
    %2300 = vmatmul.mubr.f32.gmra.mrb[0].mxu0 %v1390
    %v2301 = vpop.f32.mrb[0].mxu0
    %v2302 = vadd.f32 %v2223, %v2301
    %v2303 = vpop.f32.mrb[0].mxu0
    %2304 = vmatprep.mubr.f32.mxu0 0.0
    %2305 = vmatmul.mubr.f32.gmra.mrb[0].mxu0 %v1552
    %v2306 = vpop.f32.mrb[0].mxu0
    %v2307 = vadd.f32 %v2223, %v2306
    %v2308 = vpop.f32.mrb[0].mxu0
    %2309 = vmatprep.mubr.f32.mxu0 0.0
    %2310 = vmatmul.mubr.f32.gmra.mrb[0].mxu0 %v1714
    %v2311 = vpop.f32.mrb[0].mxu0
    %v2312 = vadd.f32 %v2223, %v2311
    %v2313 = vpop.f32.mrb[0].mxu0
    %2314 = vmatprep.mubr.f32.mxu0 0.0
    %2315 = vmatmul.mubr.f32.gmra.mrb[0].mxu0 %v1876
    %v2316 = vpop.f32.mrb[0].mxu0
    %v2317 = vadd.f32 %v2223, %v2316
    %v2318 = vpop.f32.mrb[0].mxu0
    %2319 = vmatprep.mubr.f32.mxu0 0.0
    %2320 = vmatmul.mubr.f32.gmra.mrb[0].mxu0 %v2038
    %v2321 = vpop.f32.mrb[0].mxu0
    %v2322 = vadd.f32 %v2223, %v2321
    %v2323 = vpop.f32.mrb[0].mxu0
    %2324 = vmatprep.mubr.f32.mxu0 0.0
    %2325 = vmatmul.mubr.f32.gmra.mrb[0].mxu0 %v2200
    %v2326 = vpop.f32.mrb[0].mxu0
    %v2327 = vadd.f32 %v2223, %v2326
    %v2328 = vpop.f32.mrb[0].mxu0
    %2329 = vdwg.mxu0
    %2330 = vst [vmem:[%s14] sm:$0xff] %v2292
    %2331 = vst [vmem:[%s14 + $0x8] sm:$0xff] %v2297
    %2332 = vst [vmem:[%s14 + $0x10] sm:$0xff] %v2302
    %2333 = vst [vmem:[%s14 + $0x18] sm:$0xff] %v2307
    %2334 = vst [vmem:[%s14 + $0x20] sm:$0xff] %v2312
    %2335 = vst [vmem:[%s14 + $0x28] sm:$0xff] %v2317
    %2336 = vst [vmem:[%s14 + $0x30] sm:$0xff] %v2322
    %2337 = vst [vmem:[%s14 + $0x38] sm:$0xff] %v2327
    // Predicated region
    $region74: #{_lambda_.1} parent=1 // pred_check
      _
    $region75: #{_lambda_.1} parent=1 // pred_check_branch
      %2339 = sbr.rel (0) target = $region77
    $region76: #{_lambda_.1} parent=1 // pred_region
      _
    $region77: #{_lambda_.1} parent=1 // pred_fallthru
      _
    // Predicated region
    $region78: #{_lambda_.1} parent=1 // pred_check
      _
    $region79: #{_lambda_.1} parent=1 // pred_check_branch
      %2341 = sbr.rel (0) target = $region81
    $region80: #{_lambda_.1} parent=1 // pred_region
      _
    $region81: #{_lambda_.1} parent=1 // pred_fallthru
      _
    // Predicated region
    $region82: #{_lambda_.1} parent=1 // pred_check
      _
    $region83: #{_lambda_.1} parent=1 // pred_check_branch
      %2343 = sbr.rel (0) target = $region85
    $region84: #{_lambda_.1} parent=1 // pred_region
      _
    $region85: #{_lambda_.1} parent=1 // pred_fallthru
      _
    // Predicated region
    $region86: #{_lambda_.1} parent=1 // pred_check
      _
    $region87: #{_lambda_.1} parent=1 // pred_check_branch
      %2345 = sbr.rel (0) target = $region89
    $region88: #{_lambda_.1} parent=1 // pred_region
      _
    $region89: #{_lambda_.1} parent=1 // pred_fallthru
      _
    %2346 = vsyncpa [#allocation3], 1
    %2347 = vsyncpa [#allocation5], 1
    %2348 = vsyncpa [#allocation8], 1

</llo_original>
